<compile_context>
chip_gen: v7x
topology: tpu7x:2x2x1
jax: 0.10.0
libtpu: 0.0.40
codegen_flags: <defaults>
</compile_context>

<pallas_src>
import jax
import jax.numpy as jnp
from jax import lax
from jax.experimental import pallas as pl
from jax.experimental.pallas import tpu as pltpu
import numpy as np

_PREC = lax.Precision.DEFAULT


def _sigmoid(x):
    # Exact logistic sigmoid via one EUP tanh push + cheap VALU scale/add.
    return 0.5 * (1.0 + jnp.tanh(0.5 * x))


# ----------------------------- Pallas kernel -------------------------------
def drum_rnn_kernel(x_ref,        # (T*Bp, I)   time-major, batch padded to Bp
                    wih0_ref,     # (I, 4H)
                    whh0_ref,     # (H, 4H)
                    b0_ref,       # (1, 4H)     b_ih0 + b_hh0
                    wih1_ref,     # (H, 4H)
                    whh1_ref,     # (H, 4H)
                    b1_ref,       # (1, 4H)     b_ih1 + b_hh1
                    wfc_ref,      # (H, Dp)     lane-padded FC weight
                    bfc_ref,      # (1, Dp)
                    out_ref,      # (T*Bp, Dp)
                    hn_ref,       # (2, Bp, H)
                    cn_ref):      # (2, Bp, H)
    TB, _ = x_ref.shape
    H = whh0_ref.shape[0]
    Bp = hn_ref.shape[1]
    T = TB // Bp

    # Hoisted layer-0 input projection: one big lane-dense matmul, bias folded
    # in, entirely off the recurrent chain.
    xproj = (jnp.dot(x_ref[...], wih0_ref[...],
                     preferred_element_type=jnp.float32, precision=_PREC)
             + b0_ref[...])                                # (T*Bp, 4H)

    whh0 = whh0_ref[...]
    wih1 = wih1_ref[...]
    whh1 = whh1_ref[...]
    b1b = jnp.broadcast_to(b1_ref[...], (Bp, 4 * H))       # hoisted broadcast

    def gate_act(gates, c):
        # One whole-vreg sigmoid over all 4H lanes + one tanh on the g slice.
        sig = _sigmoid(gates)
        i = sig[:, 0 * H:1 * H]
        f = sig[:, 1 * H:2 * H]
        o = sig[:, 3 * H:4 * H]
        g = jnp.tanh(gates[:, 2 * H:3 * H])
        c_new = f * c + i * g
        h_new = o * jnp.tanh(c_new)
        return h_new, c_new

    # ---- t = 0: h0 = h1 = c0 = c1 = 0, so skip both recurrent matmuls -------
    g0 = xproj[0:Bp, :]
    h0, c0 = gate_act(g0, jnp.zeros((Bp, H), jnp.float32))
    g1 = jnp.dot(h0, wih1, preferred_element_type=jnp.float32,
                 precision=_PREC) + b1b
    h1, c1 = gate_act(g1, jnp.zeros((Bp, H), jnp.float32))
    h1s = [h1]
    # Pre-issue next step's layer-1 recurrent projection (pipelined one ahead).
    h1_proj = jnp.dot(h1, whh1, preferred_element_type=jnp.float32,
                      precision=_PREC)

    # ---- t >= 1: fully unrolled (T is small and static) ---------------------
    for t in range(1, T):
        r0 = t * Bp                                        # static, 8-aligned
        g0 = xproj[r0:r0 + Bp, :] + jnp.dot(
            h0, whh0, preferred_element_type=jnp.float32, precision=_PREC)
        h0, c0 = gate_act(g0, c0)
        # h1 @ W_hh1 was issued last step; only h0 @ W_ih1 is on the chain.
        g1 = jnp.dot(h0, wih1, preferred_element_type=jnp.float32,
                     precision=_PREC) + (h1_proj + b1b)
        h1, c1 = gate_act(g1, c1)
        h1s.append(h1)
        if t + 1 < T:
            h1_proj = jnp.dot(h1, whh1, preferred_element_type=jnp.float32,
                              precision=_PREC)

    # ---- bulk FC + sigmoid, single lane-dense (unmasked) store --------------
    h1_all = jnp.concatenate(h1s, axis=0)                  # (T*Bp, H)
    logits = (jnp.dot(h1_all, wfc_ref[...],
                      preferred_element_type=jnp.float32, precision=_PREC)
              + bfc_ref[...])
    out_ref[...] = _sigmoid(logits)

    hn_ref[0] = h0
    hn_ref[1] = h1
    cn_ref[0] = c0
    cn_ref[1] = c1


# ------------------------------- wrapper ------------------------------------
def drum_rnn_forward(x, params):
    """x: (B, T, input_size) float32. Returns (out, (h_n, c_n)) like PyTorch."""
    B, T, I = x.shape
    (wih0, whh0, b0, wih1, whh1, b1, wfc, bfc) = params
    H = whh0.shape[0]
    D = wfc.shape[1]

    Bp = ((B + 7) // 8) * 8          # sublane granule
    Dp = ((D + 127) // 128) * 128    # lane granule for the output store

    # Time-major, batch-padded, flattened rows so every in-kernel per-step
    # slice is an aligned, unmasked sublane group.  Padded rows are zero.
    x_tm = jnp.transpose(x, (1, 0, 2))                       # (T, B, I)
    x_tm = jnp.pad(x_tm, ((0, 0), (0, Bp - B), (0, 0)))      # (T, Bp, I)
    x2d = x_tm.reshape(T * Bp, I)

    # Lane-pad the FC so the bulk output store is lane-dense.
    wfc_p = jnp.pad(wfc, ((0, 0), (0, Dp - D)))
    bfc_p = jnp.pad(bfc, ((0, 0), (0, Dp - D)))

    vmem = pl.BlockSpec(memory_space=pltpu.MemorySpace.VMEM)
    out2d, h_n, c_n = pl.pallas_call(
        drum_rnn_kernel,
        out_shape=(
            jax.ShapeDtypeStruct((T * Bp, Dp), jnp.float32),
            jax.ShapeDtypeStruct((2, Bp, H), jnp.float32),
            jax.ShapeDtypeStruct((2, Bp, H), jnp.float32),
        ),
        in_specs=[vmem] * 9,
        out_specs=(vmem, vmem, vmem),
    )(x2d, wih0, whh0, b0, wih1, whh1, b1, wfc_p, bfc_p)

    # Strip batch / lane padding back to the real shapes.
    out = jnp.transpose(out2d.reshape(T, Bp, Dp)[:, :B, :D], (1, 0, 2))
    return out, (h_n[:, :B, :], c_n[:, :B, :])


# ------------------------ pure-JAX reference (check) -------------------------
def drum_rnn_reference(x, params):
    (wih0, whh0, b0, wih1, whh1, b1, wfc, bfc) = params
    B, T, _ = x.shape
    H = whh0.shape[0]

    def cell(xt, h, c, wih, whh, b):
        gates = xt @ wih + h @ whh + b
        i = jax.nn.sigmoid(gates[:, 0 * H:1 * H])
        f = jax.nn.sigmoid(gates[:, 1 * H:2 * H])
        g = jnp.tanh(gates[:, 2 * H:3 * H])
        o = jax.nn.sigmoid(gates[:, 3 * H:4 * H])
        c = f * c + i * g
        h = o * jnp.tanh(c)
        return h, c

    h0 = c0 = h1 = c1 = jnp.zeros((B, H), jnp.float32)
    outs = []
    for t in range(T):
        h0, c0 = cell(x[:, t, :], h0, c0, wih0, whh0, b0)
        h1, c1 = cell(h0, h1, c1, wih1, whh1, b1)
        outs.append(jax.nn.sigmoid(h1 @ wfc + bfc))
    out = jnp.stack(outs, axis=1)
    return out, (jnp.stack([h0, h1]), jnp.stack([c0, c1]))


# ---------------------------- parameter init ---------------------------------
def init_params(key, input_size, hidden_size, num_drums):
    """Deterministic synthetic init, PyTorch-style uniform(-1/sqrt(H), 1/sqrt(H)).

    Weights stored transposed relative to PyTorch: (in, 4H); gate order i,f,g,o.
    """
    H = hidden_size
    k_lstm = 1.0 / np.sqrt(H)
    k_fc = 1.0 / np.sqrt(H)
    keys = jax.random.split(key, 8)
    u = lambda kk, shape, bound: jax.random.uniform(
        kk, shape, jnp.float32, -bound, bound)

    wih0 = u(keys[0], (input_size, 4 * H), k_lstm)
    whh0 = u(keys[1], (H, 4 * H), k_lstm)
    b0 = u(keys[2], (1, 4 * H), k_lstm) + u(keys[3], (1, 4 * H), k_lstm)
    wih1 = u(keys[4], (H, 4 * H), k_lstm)
    whh1 = u(keys[5], (H, 4 * H), k_lstm)
    b1 = u(keys[6], (1, 4 * H), k_lstm) + u(keys[7], (1, 4 * H), k_lstm)
    kfc_w, kfc_b = jax.random.split(jax.random.fold_in(key, 99))
    wfc = u(kfc_w, (H, num_drums), k_fc)
    bfc = u(kfc_b, (1, num_drums), k_fc)
    return (wih0, whh0, b0, wih1, whh1, b1, wfc, bfc)


if __name__ == "__main__":
    # Small shapes consistent with the module's forward:
    # batch=2, seq=8, input_size=32, hidden_size=32, num_layers=2, num_drums=9
    # (hidden=32 -> 4H = 128 lanes, one full vreg of gates per cell)
    B, T, I, H, D = 2, 8, 32, 32, 9

    key = jax.random.PRNGKey(0)
    kx, kp = jax.random.split(key)
    x = jax.random.normal(kx, (B, T, I), jnp.float32)
    params = init_params(kp, I, H, D)

    out, (h_n, c_n) = drum_rnn_forward(x, params)
    jax.block_until_ready((out, h_n, c_n))

    # sanity check against a pure-JAX reference
    ref_out, (ref_h, ref_c) = drum_rnn_reference(x, params)
    np.testing.assert_allclose(np.asarray(out), np.asarray(ref_out),
                               rtol=1e-4, atol=5e-5)
    np.testing.assert_allclose(np.asarray(h_n), np.asarray(ref_h),
                               rtol=1e-4, atol=5e-5)
    np.testing.assert_allclose(np.asarray(c_n), np.asarray(ref_c),
                               rtol=1e-4, atol=5e-5)

    assert out.shape == (B, T, D)
    assert h_n.shape == (2, B, H) and c_n.shape == (2, B, H)

    print("KERNEL_OK")
</pallas_src>

<mosaic_0001>
module attributes {stable_mosaic.version = 11 : i64} {
  func.func @drum_rnn_kernel(%arg0: memref<64x32xf32, #tpu.memory_space<vmem>>, %arg1: memref<32x128xf32, #tpu.memory_space<vmem>>, %arg2: memref<32x128xf32, #tpu.memory_space<vmem>>, %arg3: memref<1x128xf32, #tpu.memory_space<vmem>>, %arg4: memref<32x128xf32, #tpu.memory_space<vmem>>, %arg5: memref<32x128xf32, #tpu.memory_space<vmem>>, %arg6: memref<1x128xf32, #tpu.memory_space<vmem>>, %arg7: memref<32x128xf32, #tpu.memory_space<vmem>>, %arg8: memref<1x128xf32, #tpu.memory_space<vmem>>, %arg9: memref<64x128xf32, #tpu.memory_space<vmem>>, %arg10: memref<2x8x32xf32, #tpu.memory_space<vmem>>, %arg11: memref<2x8x32xf32, #tpu.memory_space<vmem>>) attributes {dimension_semantics = [], scalar_prefetch = 0 : i64, scratch_operands = 0 : i64, tpu.core_type = #tpu.core_type<tc>} {
    %c0 = arith.constant 0 : index
    %c0_0 = arith.constant 0 : index
    %0 = vector.load %arg0[%c0, %c0_0] : memref<64x32xf32, #tpu.memory_space<vmem>>, vector<64x32xf32>
    %c0_1 = arith.constant 0 : index
    %c0_2 = arith.constant 0 : index
    %1 = vector.load %arg1[%c0_1, %c0_2] : memref<32x128xf32, #tpu.memory_space<vmem>>, vector<32x128xf32>
    %cst = arith.constant dense<0.000000e+00> : vector<64x128xf32>
    %2 = tpu.matmul %0, %1, %cst {dimension_numbers = #tpu.dot_dimension_numbers<[1], [0], [0], [1], [0, 0, 1, 1], [], []>} : vector<64x32xf32>, vector<32x128xf32>, vector<64x128xf32> -> vector<64x128xf32>
    %c0_3 = arith.constant 0 : index
    %c0_4 = arith.constant 0 : index
    %3 = vector.load %arg3[%c0_3, %c0_4] : memref<1x128xf32, #tpu.memory_space<vmem>>, vector<1x128xf32>
    %4 = vector.broadcast %3 : vector<1x128xf32> to vector<64x128xf32>
    %5 = arith.addf %2, %4 : vector<64x128xf32>
    %c0_5 = arith.constant 0 : index
    %c0_6 = arith.constant 0 : index
    %6 = vector.load %arg2[%c0_5, %c0_6] : memref<32x128xf32, #tpu.memory_space<vmem>>, vector<32x128xf32>
    %c0_7 = arith.constant 0 : index
    %c0_8 = arith.constant 0 : index
    %7 = vector.load %arg4[%c0_7, %c0_8] : memref<32x128xf32, #tpu.memory_space<vmem>>, vector<32x128xf32>
    %c0_9 = arith.constant 0 : index
    %c0_10 = arith.constant 0 : index
    %8 = vector.load %arg5[%c0_9, %c0_10] : memref<32x128xf32, #tpu.memory_space<vmem>>, vector<32x128xf32>
    %c0_11 = arith.constant 0 : index
    %c0_12 = arith.constant 0 : index
    %9 = vector.load %arg6[%c0_11, %c0_12] : memref<1x128xf32, #tpu.memory_space<vmem>>, vector<1x128xf32>
    %10 = vector.shape_cast %9 : vector<1x128xf32> to vector<1x128xf32>
    %11 = vector.broadcast %10 : vector<1x128xf32> to vector<8x128xf32>
    %12 = vector.extract_strided_slice %5 {offsets = [0, 0], sizes = [8, 128], strides = [1, 1]} : vector<64x128xf32> to vector<8x128xf32>
    %cst_13 = arith.constant 0.000000e+00 : f32
    %13 = vector.broadcast %cst_13 : f32 to vector<8x32xf32>
    %cst_14 = arith.constant 5.000000e-01 : f32
    %14 = vector.broadcast %cst_14 : f32 to vector<8x128xf32>
    %15 = arith.mulf %14, %12 : vector<8x128xf32>
    %16 = math.tanh %15 : vector<8x128xf32>
    %cst_15 = arith.constant 1.000000e+00 : f32
    %17 = vector.broadcast %cst_15 : f32 to vector<8x128xf32>
    %18 = arith.addf %17, %16 : vector<8x128xf32>
    %cst_16 = arith.constant 5.000000e-01 : f32
    %19 = vector.broadcast %cst_16 : f32 to vector<8x128xf32>
    %20 = arith.mulf %19, %18 : vector<8x128xf32>
    %21 = vector.extract_strided_slice %20 {offsets = [0, 0], sizes = [8, 32], strides = [1, 1]} : vector<8x128xf32> to vector<8x32xf32>
    %22 = vector.extract_strided_slice %20 {offsets = [0, 32], sizes = [8, 32], strides = [1, 1]} : vector<8x128xf32> to vector<8x32xf32>
    %23 = vector.extract_strided_slice %20 {offsets = [0, 96], sizes = [8, 32], strides = [1, 1]} : vector<8x128xf32> to vector<8x32xf32>
    %24 = vector.extract_strided_slice %12 {offsets = [0, 64], sizes = [8, 32], strides = [1, 1]} : vector<8x128xf32> to vector<8x32xf32>
    %25 = math.tanh %24 : vector<8x32xf32>
    %26 = arith.mulf %22, %13 : vector<8x32xf32>
    %27 = arith.mulf %21, %25 : vector<8x32xf32>
    %28 = arith.addf %26, %27 : vector<8x32xf32>
    %29 = math.tanh %28 : vector<8x32xf32>
    %30 = arith.mulf %23, %29 : vector<8x32xf32>
    %cst_17 = arith.constant dense<0.000000e+00> : vector<8x128xf32>
    %31 = tpu.matmul %30, %7, %cst_17 {dimension_numbers = #tpu.dot_dimension_numbers<[1], [0], [0], [1], [0, 0, 1, 1], [], []>} : vector<8x32xf32>, vector<32x128xf32>, vector<8x128xf32> -> vector<8x128xf32>
    %32 = arith.addf %31, %11 : vector<8x128xf32>
    %cst_18 = arith.constant 0.000000e+00 : f32
    %33 = vector.broadcast %cst_18 : f32 to vector<8x32xf32>
    %cst_19 = arith.constant 5.000000e-01 : f32
    %34 = vector.broadcast %cst_19 : f32 to vector<8x128xf32>
    %35 = arith.mulf %34, %32 : vector<8x128xf32>
    %36 = math.tanh %35 : vector<8x128xf32>
    %cst_20 = arith.constant 1.000000e+00 : f32
    %37 = vector.broadcast %cst_20 : f32 to vector<8x128xf32>
    %38 = arith.addf %37, %36 : vector<8x128xf32>
    %cst_21 = arith.constant 5.000000e-01 : f32
    %39 = vector.broadcast %cst_21 : f32 to vector<8x128xf32>
    %40 = arith.mulf %39, %38 : vector<8x128xf32>
    %41 = vector.extract_strided_slice %40 {offsets = [0, 0], sizes = [8, 32], strides = [1, 1]} : vector<8x128xf32> to vector<8x32xf32>
    %42 = vector.extract_strided_slice %40 {offsets = [0, 32], sizes = [8, 32], strides = [1, 1]} : vector<8x128xf32> to vector<8x32xf32>
    %43 = vector.extract_strided_slice %40 {offsets = [0, 96], sizes = [8, 32], strides = [1, 1]} : vector<8x128xf32> to vector<8x32xf32>
    %44 = vector.extract_strided_slice %32 {offsets = [0, 64], sizes = [8, 32], strides = [1, 1]} : vector<8x128xf32> to vector<8x32xf32>
    %45 = math.tanh %44 : vector<8x32xf32>
    %46 = arith.mulf %42, %33 : vector<8x32xf32>
    %47 = arith.mulf %41, %45 : vector<8x32xf32>
    %48 = arith.addf %46, %47 : vector<8x32xf32>
    %49 = math.tanh %48 : vector<8x32xf32>
    %50 = arith.mulf %43, %49 : vector<8x32xf32>
    %cst_22 = arith.constant dense<0.000000e+00> : vector<8x128xf32>
    %51 = tpu.matmul %50, %8, %cst_22 {dimension_numbers = #tpu.dot_dimension_numbers<[1], [0], [0], [1], [0, 0, 1, 1], [], []>} : vector<8x32xf32>, vector<32x128xf32>, vector<8x128xf32> -> vector<8x128xf32>
    %52 = vector.extract_strided_slice %5 {offsets = [8, 0], sizes = [8, 128], strides = [1, 1]} : vector<64x128xf32> to vector<8x128xf32>
    %cst_23 = arith.constant dense<0.000000e+00> : vector<8x128xf32>
    %53 = tpu.matmul %30, %6, %cst_23 {dimension_numbers = #tpu.dot_dimension_numbers<[1], [0], [0], [1], [0, 0, 1, 1], [], []>} : vector<8x32xf32>, vector<32x128xf32>, vector<8x128xf32> -> vector<8x128xf32>
    %54 = arith.addf %52, %53 : vector<8x128xf32>
    %cst_24 = arith.constant 5.000000e-01 : f32
    %55 = vector.broadcast %cst_24 : f32 to vector<8x128xf32>
    %56 = arith.mulf %55, %54 : vector<8x128xf32>
    %57 = math.tanh %56 : vector<8x128xf32>
    %cst_25 = arith.constant 1.000000e+00 : f32
    %58 = vector.broadcast %cst_25 : f32 to vector<8x128xf32>
    %59 = arith.addf %58, %57 : vector<8x128xf32>
    %cst_26 = arith.constant 5.000000e-01 : f32
    %60 = vector.broadcast %cst_26 : f32 to vector<8x128xf32>
    %61 = arith.mulf %60, %59 : vector<8x128xf32>
    %62 = vector.extract_strided_slice %61 {offsets = [0, 0], sizes = [8, 32], strides = [1, 1]} : vector<8x128xf32> to vector<8x32xf32>
    %63 = vector.extract_strided_slice %61 {offsets = [0, 32], sizes = [8, 32], strides = [1, 1]} : vector<8x128xf32> to vector<8x32xf32>
    %64 = vector.extract_strided_slice %61 {offsets = [0, 96], sizes = [8, 32], strides = [1, 1]} : vector<8x128xf32> to vector<8x32xf32>
    %65 = vector.extract_strided_slice %54 {offsets = [0, 64], sizes = [8, 32], strides = [1, 1]} : vector<8x128xf32> to vector<8x32xf32>
    %66 = math.tanh %65 : vector<8x32xf32>
    %67 = arith.mulf %63, %28 : vector<8x32xf32>
    %68 = arith.mulf %62, %66 : vector<8x32xf32>
    %69 = arith.addf %67, %68 : vector<8x32xf32>
    %70 = math.tanh %69 : vector<8x32xf32>
    %71 = arith.mulf %64, %70 : vector<8x32xf32>
    %cst_27 = arith.constant dense<0.000000e+00> : vector<8x128xf32>
    %72 = tpu.matmul %71, %7, %cst_27 {dimension_numbers = #tpu.dot_dimension_numbers<[1], [0], [0], [1], [0, 0, 1, 1], [], []>} : vector<8x32xf32>, vector<32x128xf32>, vector<8x128xf32> -> vector<8x128xf32>
    %73 = arith.addf %51, %11 : vector<8x128xf32>
    %74 = arith.addf %72, %73 : vector<8x128xf32>
    %cst_28 = arith.constant 5.000000e-01 : f32
    %75 = vector.broadcast %cst_28 : f32 to vector<8x128xf32>
    %76 = arith.mulf %75, %74 : vector<8x128xf32>
    %77 = math.tanh %76 : vector<8x128xf32>
    %cst_29 = arith.constant 1.000000e+00 : f32
    %78 = vector.broadcast %cst_29 : f32 to vector<8x128xf32>
    %79 = arith.addf %78, %77 : vector<8x128xf32>
    %cst_30 = arith.constant 5.000000e-01 : f32
    %80 = vector.broadcast %cst_30 : f32 to vector<8x128xf32>
    %81 = arith.mulf %80, %79 : vector<8x128xf32>
    %82 = vector.extract_strided_slice %81 {offsets = [0, 0], sizes = [8, 32], strides = [1, 1]} : vector<8x128xf32> to vector<8x32xf32>
    %83 = vector.extract_strided_slice %81 {offsets = [0, 32], sizes = [8, 32], strides = [1, 1]} : vector<8x128xf32> to vector<8x32xf32>
    %84 = vector.extract_strided_slice %81 {offsets = [0, 96], sizes = [8, 32], strides = [1, 1]} : vector<8x128xf32> to vector<8x32xf32>
    %85 = vector.extract_strided_slice %74 {offsets = [0, 64], sizes = [8, 32], strides = [1, 1]} : vector<8x128xf32> to vector<8x32xf32>
    %86 = math.tanh %85 : vector<8x32xf32>
    %87 = arith.mulf %83, %48 : vector<8x32xf32>
    %88 = arith.mulf %82, %86 : vector<8x32xf32>
    %89 = arith.addf %87, %88 : vector<8x32xf32>
    %90 = math.tanh %89 : vector<8x32xf32>
    %91 = arith.mulf %84, %90 : vector<8x32xf32>
    %cst_31 = arith.constant dense<0.000000e+00> : vector<8x128xf32>
    %92 = tpu.matmul %91, %8, %cst_31 {dimension_numbers = #tpu.dot_dimension_numbers<[1], [0], [0], [1], [0, 0, 1, 1], [], []>} : vector<8x32xf32>, vector<32x128xf32>, vector<8x128xf32> -> vector<8x128xf32>
    %93 = vector.extract_strided_slice %5 {offsets = [16, 0], sizes = [8, 128], strides = [1, 1]} : vector<64x128xf32> to vector<8x128xf32>
    %cst_32 = arith.constant dense<0.000000e+00> : vector<8x128xf32>
    %94 = tpu.matmul %71, %6, %cst_32 {dimension_numbers = #tpu.dot_dimension_numbers<[1], [0], [0], [1], [0, 0, 1, 1], [], []>} : vector<8x32xf32>, vector<32x128xf32>, vector<8x128xf32> -> vector<8x128xf32>
    %95 = arith.addf %93, %94 : vector<8x128xf32>
    %cst_33 = arith.constant 5.000000e-01 : f32
    %96 = vector.broadcast %cst_33 : f32 to vector<8x128xf32>
    %97 = arith.mulf %96, %95 : vector<8x128xf32>
    %98 = math.tanh %97 : vector<8x128xf32>
    %cst_34 = arith.constant 1.000000e+00 : f32
    %99 = vector.broadcast %cst_34 : f32 to vector<8x128xf32>
    %100 = arith.addf %99, %98 : vector<8x128xf32>
    %cst_35 = arith.constant 5.000000e-01 : f32
    %101 = vector.broadcast %cst_35 : f32 to vector<8x128xf32>
    %102 = arith.mulf %101, %100 : vector<8x128xf32>
    %103 = vector.extract_strided_slice %102 {offsets = [0, 0], sizes = [8, 32], strides = [1, 1]} : vector<8x128xf32> to vector<8x32xf32>
    %104 = vector.extract_strided_slice %102 {offsets = [0, 32], sizes = [8, 32], strides = [1, 1]} : vector<8x128xf32> to vector<8x32xf32>
    %105 = vector.extract_strided_slice %102 {offsets = [0, 96], sizes = [8, 32], strides = [1, 1]} : vector<8x128xf32> to vector<8x32xf32>
    %106 = vector.extract_strided_slice %95 {offsets = [0, 64], sizes = [8, 32], strides = [1, 1]} : vector<8x128xf32> to vector<8x32xf32>
    %107 = math.tanh %106 : vector<8x32xf32>
    %108 = arith.mulf %104, %69 : vector<8x32xf32>
    %109 = arith.mulf %103, %107 : vector<8x32xf32>
    %110 = arith.addf %108, %109 : vector<8x32xf32>
    %111 = math.tanh %110 : vector<8x32xf32>
    %112 = arith.mulf %105, %111 : vector<8x32xf32>
    %cst_36 = arith.constant dense<0.000000e+00> : vector<8x128xf32>
    %113 = tpu.matmul %112, %7, %cst_36 {dimension_numbers = #tpu.dot_dimension_numbers<[1], [0], [0], [1], [0, 0, 1, 1], [], []>} : vector<8x32xf32>, vector<32x128xf32>, vector<8x128xf32> -> vector<8x128xf32>
    %114 = arith.addf %92, %11 : vector<8x128xf32>
    %115 = arith.addf %113, %114 : vector<8x128xf32>
    %cst_37 = arith.constant 5.000000e-01 : f32
    %116 = vector.broadcast %cst_37 : f32 to vector<8x128xf32>
    %117 = arith.mulf %116, %115 : vector<8x128xf32>
    %118 = math.tanh %117 : vector<8x128xf32>
    %cst_38 = arith.constant 1.000000e+00 : f32
    %119 = vector.broadcast %cst_38 : f32 to vector<8x128xf32>
    %120 = arith.addf %119, %118 : vector<8x128xf32>
    %cst_39 = arith.constant 5.000000e-01 : f32
    %121 = vector.broadcast %cst_39 : f32 to vector<8x128xf32>
    %122 = arith.mulf %121, %120 : vector<8x128xf32>
    %123 = vector.extract_strided_slice %122 {offsets = [0, 0], sizes = [8, 32], strides = [1, 1]} : vector<8x128xf32> to vector<8x32xf32>
    %124 = vector.extract_strided_slice %122 {offsets = [0, 32], sizes = [8, 32], strides = [1, 1]} : vector<8x128xf32> to vector<8x32xf32>
    %125 = vector.extract_strided_slice %122 {offsets = [0, 96], sizes = [8, 32], strides = [1, 1]} : vector<8x128xf32> to vector<8x32xf32>
    %126 = vector.extract_strided_slice %115 {offsets = [0, 64], sizes = [8, 32], strides = [1, 1]} : vector<8x128xf32> to vector<8x32xf32>
    %127 = math.tanh %126 : vector<8x32xf32>
    %128 = arith.mulf %124, %89 : vector<8x32xf32>
    %129 = arith.mulf %123, %127 : vector<8x32xf32>
    %130 = arith.addf %128, %129 : vector<8x32xf32>
    %131 = math.tanh %130 : vector<8x32xf32>
    %132 = arith.mulf %125, %131 : vector<8x32xf32>
    %cst_40 = arith.constant dense<0.000000e+00> : vector<8x128xf32>
    %133 = tpu.matmul %132, %8, %cst_40 {dimension_numbers = #tpu.dot_dimension_numbers<[1], [0], [0], [1], [0, 0, 1, 1], [], []>} : vector<8x32xf32>, vector<32x128xf32>, vector<8x128xf32> -> vector<8x128xf32>
    %134 = vector.extract_strided_slice %5 {offsets = [24, 0], sizes = [8, 128], strides = [1, 1]} : vector<64x128xf32> to vector<8x128xf32>
    %cst_41 = arith.constant dense<0.000000e+00> : vector<8x128xf32>
    %135 = tpu.matmul %112, %6, %cst_41 {dimension_numbers = #tpu.dot_dimension_numbers<[1], [0], [0], [1], [0, 0, 1, 1], [], []>} : vector<8x32xf32>, vector<32x128xf32>, vector<8x128xf32> -> vector<8x128xf32>
    %136 = arith.addf %134, %135 : vector<8x128xf32>
    %cst_42 = arith.constant 5.000000e-01 : f32
    %137 = vector.broadcast %cst_42 : f32 to vector<8x128xf32>
    %138 = arith.mulf %137, %136 : vector<8x128xf32>
    %139 = math.tanh %138 : vector<8x128xf32>
    %cst_43 = arith.constant 1.000000e+00 : f32
    %140 = vector.broadcast %cst_43 : f32 to vector<8x128xf32>
    %141 = arith.addf %140, %139 : vector<8x128xf32>
    %cst_44 = arith.constant 5.000000e-01 : f32
    %142 = vector.broadcast %cst_44 : f32 to vector<8x128xf32>
    %143 = arith.mulf %142, %141 : vector<8x128xf32>
    %144 = vector.extract_strided_slice %143 {offsets = [0, 0], sizes = [8, 32], strides = [1, 1]} : vector<8x128xf32> to vector<8x32xf32>
    %145 = vector.extract_strided_slice %143 {offsets = [0, 32], sizes = [8, 32], strides = [1, 1]} : vector<8x128xf32> to vector<8x32xf32>
    %146 = vector.extract_strided_slice %143 {offsets = [0, 96], sizes = [8, 32], strides = [1, 1]} : vector<8x128xf32> to vector<8x32xf32>
    %147 = vector.extract_strided_slice %136 {offsets = [0, 64], sizes = [8, 32], strides = [1, 1]} : vector<8x128xf32> to vector<8x32xf32>
    %148 = math.tanh %147 : vector<8x32xf32>
    %149 = arith.mulf %145, %110 : vector<8x32xf32>
    %150 = arith.mulf %144, %148 : vector<8x32xf32>
    %151 = arith.addf %149, %150 : vector<8x32xf32>
    %152 = math.tanh %151 : vector<8x32xf32>
    %153 = arith.mulf %146, %152 : vector<8x32xf32>
    %cst_45 = arith.constant dense<0.000000e+00> : vector<8x128xf32>
    %154 = tpu.matmul %153, %7, %cst_45 {dimension_numbers = #tpu.dot_dimension_numbers<[1], [0], [0], [1], [0, 0, 1, 1], [], []>} : vector<8x32xf32>, vector<32x128xf32>, vector<8x128xf32> -> vector<8x128xf32>
    %155 = arith.addf %133, %11 : vector<8x128xf32>
    %156 = arith.addf %154, %155 : vector<8x128xf32>
    %cst_46 = arith.constant 5.000000e-01 : f32
    %157 = vector.broadcast %cst_46 : f32 to vector<8x128xf32>
    %158 = arith.mulf %157, %156 : vector<8x128xf32>
    %159 = math.tanh %158 : vector<8x128xf32>
    %cst_47 = arith.constant 1.000000e+00 : f32
    %160 = vector.broadcast %cst_47 : f32 to vector<8x128xf32>
    %161 = arith.addf %160, %159 : vector<8x128xf32>
    %cst_48 = arith.constant 5.000000e-01 : f32
    %162 = vector.broadcast %cst_48 : f32 to vector<8x128xf32>
    %163 = arith.mulf %162, %161 : vector<8x128xf32>
    %164 = vector.extract_strided_slice %163 {offsets = [0, 0], sizes = [8, 32], strides = [1, 1]} : vector<8x128xf32> to vector<8x32xf32>
    %165 = vector.extract_strided_slice %163 {offsets = [0, 32], sizes = [8, 32], strides = [1, 1]} : vector<8x128xf32> to vector<8x32xf32>
    %166 = vector.extract_strided_slice %163 {offsets = [0, 96], sizes = [8, 32], strides = [1, 1]} : vector<8x128xf32> to vector<8x32xf32>
    %167 = vector.extract_strided_slice %156 {offsets = [0, 64], sizes = [8, 32], strides = [1, 1]} : vector<8x128xf32> to vector<8x32xf32>
    %168 = math.tanh %167 : vector<8x32xf32>
    %169 = arith.mulf %165, %130 : vector<8x32xf32>
    %170 = arith.mulf %164, %168 : vector<8x32xf32>
    %171 = arith.addf %169, %170 : vector<8x32xf32>
    %172 = math.tanh %171 : vector<8x32xf32>
    %173 = arith.mulf %166, %172 : vector<8x32xf32>
    %cst_49 = arith.constant dense<0.000000e+00> : vector<8x128xf32>
    %174 = tpu.matmul %173, %8, %cst_49 {dimension_numbers = #tpu.dot_dimension_numbers<[1], [0], [0], [1], [0, 0, 1, 1], [], []>} : vector<8x32xf32>, vector<32x128xf32>, vector<8x128xf32> -> vector<8x128xf32>
    %175 = vector.extract_strided_slice %5 {offsets = [32, 0], sizes = [8, 128], strides = [1, 1]} : vector<64x128xf32> to vector<8x128xf32>
    %cst_50 = arith.constant dense<0.000000e+00> : vector<8x128xf32>
    %176 = tpu.matmul %153, %6, %cst_50 {dimension_numbers = #tpu.dot_dimension_numbers<[1], [0], [0], [1], [0, 0, 1, 1], [], []>} : vector<8x32xf32>, vector<32x128xf32>, vector<8x128xf32> -> vector<8x128xf32>
    %177 = arith.addf %175, %176 : vector<8x128xf32>
    %cst_51 = arith.constant 5.000000e-01 : f32
    %178 = vector.broadcast %cst_51 : f32 to vector<8x128xf32>
    %179 = arith.mulf %178, %177 : vector<8x128xf32>
    %180 = math.tanh %179 : vector<8x128xf32>
    %cst_52 = arith.constant 1.000000e+00 : f32
    %181 = vector.broadcast %cst_52 : f32 to vector<8x128xf32>
    %182 = arith.addf %181, %180 : vector<8x128xf32>
    %cst_53 = arith.constant 5.000000e-01 : f32
    %183 = vector.broadcast %cst_53 : f32 to vector<8x128xf32>
    %184 = arith.mulf %183, %182 : vector<8x128xf32>
    %185 = vector.extract_strided_slice %184 {offsets = [0, 0], sizes = [8, 32], strides = [1, 1]} : vector<8x128xf32> to vector<8x32xf32>
    %186 = vector.extract_strided_slice %184 {offsets = [0, 32], sizes = [8, 32], strides = [1, 1]} : vector<8x128xf32> to vector<8x32xf32>
    %187 = vector.extract_strided_slice %184 {offsets = [0, 96], sizes = [8, 32], strides = [1, 1]} : vector<8x128xf32> to vector<8x32xf32>
    %188 = vector.extract_strided_slice %177 {offsets = [0, 64], sizes = [8, 32], strides = [1, 1]} : vector<8x128xf32> to vector<8x32xf32>
    %189 = math.tanh %188 : vector<8x32xf32>
    %190 = arith.mulf %186, %151 : vector<8x32xf32>
    %191 = arith.mulf %185, %189 : vector<8x32xf32>
    %192 = arith.addf %190, %191 : vector<8x32xf32>
    %193 = math.tanh %192 : vector<8x32xf32>
    %194 = arith.mulf %187, %193 : vector<8x32xf32>
    %cst_54 = arith.constant dense<0.000000e+00> : vector<8x128xf32>
    %195 = tpu.matmul %194, %7, %cst_54 {dimension_numbers = #tpu.dot_dimension_numbers<[1], [0], [0], [1], [0, 0, 1, 1], [], []>} : vector<8x32xf32>, vector<32x128xf32>, vector<8x128xf32> -> vector<8x128xf32>
    %196 = arith.addf %174, %11 : vector<8x128xf32>
    %197 = arith.addf %195, %196 : vector<8x128xf32>
    %cst_55 = arith.constant 5.000000e-01 : f32
    %198 = vector.broadcast %cst_55 : f32 to vector<8x128xf32>
    %199 = arith.mulf %198, %197 : vector<8x128xf32>
    %200 = math.tanh %199 : vector<8x128xf32>
    %cst_56 = arith.constant 1.000000e+00 : f32
    %201 = vector.broadcast %cst_56 : f32 to vector<8x128xf32>
    %202 = arith.addf %201, %200 : vector<8x128xf32>
    %cst_57 = arith.constant 5.000000e-01 : f32
    %203 = vector.broadcast %cst_57 : f32 to vector<8x128xf32>
    %204 = arith.mulf %203, %202 : vector<8x128xf32>
    %205 = vector.extract_strided_slice %204 {offsets = [0, 0], sizes = [8, 32], strides = [1, 1]} : vector<8x128xf32> to vector<8x32xf32>
    %206 = vector.extract_strided_slice %204 {offsets = [0, 32], sizes = [8, 32], strides = [1, 1]} : vector<8x128xf32> to vector<8x32xf32>
    %207 = vector.extract_strided_slice %204 {offsets = [0, 96], sizes = [8, 32], strides = [1, 1]} : vector<8x128xf32> to vector<8x32xf32>
    %208 = vector.extract_strided_slice %197 {offsets = [0, 64], sizes = [8, 32], strides = [1, 1]} : vector<8x128xf32> to vector<8x32xf32>
    %209 = math.tanh %208 : vector<8x32xf32>
    %210 = arith.mulf %206, %171 : vector<8x32xf32>
    %211 = arith.mulf %205, %209 : vector<8x32xf32>
    %212 = arith.addf %210, %211 : vector<8x32xf32>
    %213 = math.tanh %212 : vector<8x32xf32>
    %214 = arith.mulf %207, %213 : vector<8x32xf32>
    %cst_58 = arith.constant dense<0.000000e+00> : vector<8x128xf32>
    %215 = tpu.matmul %214, %8, %cst_58 {dimension_numbers = #tpu.dot_dimension_numbers<[1], [0], [0], [1], [0, 0, 1, 1], [], []>} : vector<8x32xf32>, vector<32x128xf32>, vector<8x128xf32> -> vector<8x128xf32>
    %216 = vector.extract_strided_slice %5 {offsets = [40, 0], sizes = [8, 128], strides = [1, 1]} : vector<64x128xf32> to vector<8x128xf32>
    %cst_59 = arith.constant dense<0.000000e+00> : vector<8x128xf32>
    %217 = tpu.matmul %194, %6, %cst_59 {dimension_numbers = #tpu.dot_dimension_numbers<[1], [0], [0], [1], [0, 0, 1, 1], [], []>} : vector<8x32xf32>, vector<32x128xf32>, vector<8x128xf32> -> vector<8x128xf32>
    %218 = arith.addf %216, %217 : vector<8x128xf32>
    %cst_60 = arith.constant 5.000000e-01 : f32
    %219 = vector.broadcast %cst_60 : f32 to vector<8x128xf32>
    %220 = arith.mulf %219, %218 : vector<8x128xf32>
    %221 = math.tanh %220 : vector<8x128xf32>
    %cst_61 = arith.constant 1.000000e+00 : f32
    %222 = vector.broadcast %cst_61 : f32 to vector<8x128xf32>
    %223 = arith.addf %222, %221 : vector<8x128xf32>
    %cst_62 = arith.constant 5.000000e-01 : f32
    %224 = vector.broadcast %cst_62 : f32 to vector<8x128xf32>
    %225 = arith.mulf %224, %223 : vector<8x128xf32>
    %226 = vector.extract_strided_slice %225 {offsets = [0, 0], sizes = [8, 32], strides = [1, 1]} : vector<8x128xf32> to vector<8x32xf32>
    %227 = vector.extract_strided_slice %225 {offsets = [0, 32], sizes = [8, 32], strides = [1, 1]} : vector<8x128xf32> to vector<8x32xf32>
    %228 = vector.extract_strided_slice %225 {offsets = [0, 96], sizes = [8, 32], strides = [1, 1]} : vector<8x128xf32> to vector<8x32xf32>
    %229 = vector.extract_strided_slice %218 {offsets = [0, 64], sizes = [8, 32], strides = [1, 1]} : vector<8x128xf32> to vector<8x32xf32>
    %230 = math.tanh %229 : vector<8x32xf32>
    %231 = arith.mulf %227, %192 : vector<8x32xf32>
    %232 = arith.mulf %226, %230 : vector<8x32xf32>
    %233 = arith.addf %231, %232 : vector<8x32xf32>
    %234 = math.tanh %233 : vector<8x32xf32>
    %235 = arith.mulf %228, %234 : vector<8x32xf32>
    %cst_63 = arith.constant dense<0.000000e+00> : vector<8x128xf32>
    %236 = tpu.matmul %235, %7, %cst_63 {dimension_numbers = #tpu.dot_dimension_numbers<[1], [0], [0], [1], [0, 0, 1, 1], [], []>} : vector<8x32xf32>, vector<32x128xf32>, vector<8x128xf32> -> vector<8x128xf32>
    %237 = arith.addf %215, %11 : vector<8x128xf32>
    %238 = arith.addf %236, %237 : vector<8x128xf32>
    %cst_64 = arith.constant 5.000000e-01 : f32
    %239 = vector.broadcast %cst_64 : f32 to vector<8x128xf32>
    %240 = arith.mulf %239, %238 : vector<8x128xf32>
    %241 = math.tanh %240 : vector<8x128xf32>
    %cst_65 = arith.constant 1.000000e+00 : f32
    %242 = vector.broadcast %cst_65 : f32 to vector<8x128xf32>
    %243 = arith.addf %242, %241 : vector<8x128xf32>
    %cst_66 = arith.constant 5.000000e-01 : f32
    %244 = vector.broadcast %cst_66 : f32 to vector<8x128xf32>
    %245 = arith.mulf %244, %243 : vector<8x128xf32>
    %246 = vector.extract_strided_slice %245 {offsets = [0, 0], sizes = [8, 32], strides = [1, 1]} : vector<8x128xf32> to vector<8x32xf32>
    %247 = vector.extract_strided_slice %245 {offsets = [0, 32], sizes = [8, 32], strides = [1, 1]} : vector<8x128xf32> to vector<8x32xf32>
    %248 = vector.extract_strided_slice %245 {offsets = [0, 96], sizes = [8, 32], strides = [1, 1]} : vector<8x128xf32> to vector<8x32xf32>
    %249 = vector.extract_strided_slice %238 {offsets = [0, 64], sizes = [8, 32], strides = [1, 1]} : vector<8x128xf32> to vector<8x32xf32>
    %250 = math.tanh %249 : vector<8x32xf32>
    %251 = arith.mulf %247, %212 : vector<8x32xf32>
    %252 = arith.mulf %246, %250 : vector<8x32xf32>
    %253 = arith.addf %251, %252 : vector<8x32xf32>
    %254 = math.tanh %253 : vector<8x32xf32>
    %255 = arith.mulf %248, %254 : vector<8x32xf32>
    %cst_67 = arith.constant dense<0.000000e+00> : vector<8x128xf32>
    %256 = tpu.matmul %255, %8, %cst_67 {dimension_numbers = #tpu.dot_dimension_numbers<[1], [0], [0], [1], [0, 0, 1, 1], [], []>} : vector<8x32xf32>, vector<32x128xf32>, vector<8x128xf32> -> vector<8x128xf32>
    %257 = vector.extract_strided_slice %5 {offsets = [48, 0], sizes = [8, 128], strides = [1, 1]} : vector<64x128xf32> to vector<8x128xf32>
    %cst_68 = arith.constant dense<0.000000e+00> : vector<8x128xf32>
    %258 = tpu.matmul %235, %6, %cst_68 {dimension_numbers = #tpu.dot_dimension_numbers<[1], [0], [0], [1], [0, 0, 1, 1], [], []>} : vector<8x32xf32>, vector<32x128xf32>, vector<8x128xf32> -> vector<8x128xf32>
    %259 = arith.addf %257, %258 : vector<8x128xf32>
    %cst_69 = arith.constant 5.000000e-01 : f32
    %260 = vector.broadcast %cst_69 : f32 to vector<8x128xf32>
    %261 = arith.mulf %260, %259 : vector<8x128xf32>
    %262 = math.tanh %261 : vector<8x128xf32>
    %cst_70 = arith.constant 1.000000e+00 : f32
    %263 = vector.broadcast %cst_70 : f32 to vector<8x128xf32>
    %264 = arith.addf %263, %262 : vector<8x128xf32>
    %cst_71 = arith.constant 5.000000e-01 : f32
    %265 = vector.broadcast %cst_71 : f32 to vector<8x128xf32>
    %266 = arith.mulf %265, %264 : vector<8x128xf32>
    %267 = vector.extract_strided_slice %266 {offsets = [0, 0], sizes = [8, 32], strides = [1, 1]} : vector<8x128xf32> to vector<8x32xf32>
    %268 = vector.extract_strided_slice %266 {offsets = [0, 32], sizes = [8, 32], strides = [1, 1]} : vector<8x128xf32> to vector<8x32xf32>
    %269 = vector.extract_strided_slice %266 {offsets = [0, 96], sizes = [8, 32], strides = [1, 1]} : vector<8x128xf32> to vector<8x32xf32>
    %270 = vector.extract_strided_slice %259 {offsets = [0, 64], sizes = [8, 32], strides = [1, 1]} : vector<8x128xf32> to vector<8x32xf32>
    %271 = math.tanh %270 : vector<8x32xf32>
    %272 = arith.mulf %268, %233 : vector<8x32xf32>
    %273 = arith.mulf %267, %271 : vector<8x32xf32>
    %274 = arith.addf %272, %273 : vector<8x32xf32>
    %275 = math.tanh %274 : vector<8x32xf32>
    %276 = arith.mulf %269, %275 : vector<8x32xf32>
    %cst_72 = arith.constant dense<0.000000e+00> : vector<8x128xf32>
    %277 = tpu.matmul %276, %7, %cst_72 {dimension_numbers = #tpu.dot_dimension_numbers<[1], [0], [0], [1], [0, 0, 1, 1], [], []>} : vector<8x32xf32>, vector<32x128xf32>, vector<8x128xf32> -> vector<8x128xf32>
    %278 = arith.addf %256, %11 : vector<8x128xf32>
    %279 = arith.addf %277, %278 : vector<8x128xf32>
    %cst_73 = arith.constant 5.000000e-01 : f32
    %280 = vector.broadcast %cst_73 : f32 to vector<8x128xf32>
    %281 = arith.mulf %280, %279 : vector<8x128xf32>
    %282 = math.tanh %281 : vector<8x128xf32>
    %cst_74 = arith.constant 1.000000e+00 : f32
    %283 = vector.broadcast %cst_74 : f32 to vector<8x128xf32>
    %284 = arith.addf %283, %282 : vector<8x128xf32>
    %cst_75 = arith.constant 5.000000e-01 : f32
    %285 = vector.broadcast %cst_75 : f32 to vector<8x128xf32>
    %286 = arith.mulf %285, %284 : vector<8x128xf32>
    %287 = vector.extract_strided_slice %286 {offsets = [0, 0], sizes = [8, 32], strides = [1, 1]} : vector<8x128xf32> to vector<8x32xf32>
    %288 = vector.extract_strided_slice %286 {offsets = [0, 32], sizes = [8, 32], strides = [1, 1]} : vector<8x128xf32> to vector<8x32xf32>
    %289 = vector.extract_strided_slice %286 {offsets = [0, 96], sizes = [8, 32], strides = [1, 1]} : vector<8x128xf32> to vector<8x32xf32>
    %290 = vector.extract_strided_slice %279 {offsets = [0, 64], sizes = [8, 32], strides = [1, 1]} : vector<8x128xf32> to vector<8x32xf32>
    %291 = math.tanh %290 : vector<8x32xf32>
    %292 = arith.mulf %288, %253 : vector<8x32xf32>
    %293 = arith.mulf %287, %291 : vector<8x32xf32>
    %294 = arith.addf %292, %293 : vector<8x32xf32>
    %295 = math.tanh %294 : vector<8x32xf32>
    %296 = arith.mulf %289, %295 : vector<8x32xf32>
    %cst_76 = arith.constant dense<0.000000e+00> : vector<8x128xf32>
    %297 = tpu.matmul %296, %8, %cst_76 {dimension_numbers = #tpu.dot_dimension_numbers<[1], [0], [0], [1], [0, 0, 1, 1], [], []>} : vector<8x32xf32>, vector<32x128xf32>, vector<8x128xf32> -> vector<8x128xf32>
    %298 = vector.extract_strided_slice %5 {offsets = [56, 0], sizes = [8, 128], strides = [1, 1]} : vector<64x128xf32> to vector<8x128xf32>
    %cst_77 = arith.constant dense<0.000000e+00> : vector<8x128xf32>
    %299 = tpu.matmul %276, %6, %cst_77 {dimension_numbers = #tpu.dot_dimension_numbers<[1], [0], [0], [1], [0, 0, 1, 1], [], []>} : vector<8x32xf32>, vector<32x128xf32>, vector<8x128xf32> -> vector<8x128xf32>
    %300 = arith.addf %298, %299 : vector<8x128xf32>
    %cst_78 = arith.constant 5.000000e-01 : f32
    %301 = vector.broadcast %cst_78 : f32 to vector<8x128xf32>
    %302 = arith.mulf %301, %300 : vector<8x128xf32>
    %303 = math.tanh %302 : vector<8x128xf32>
    %cst_79 = arith.constant 1.000000e+00 : f32
    %304 = vector.broadcast %cst_79 : f32 to vector<8x128xf32>
    %305 = arith.addf %304, %303 : vector<8x128xf32>
    %cst_80 = arith.constant 5.000000e-01 : f32
    %306 = vector.broadcast %cst_80 : f32 to vector<8x128xf32>
    %307 = arith.mulf %306, %305 : vector<8x128xf32>
    %308 = vector.extract_strided_slice %307 {offsets = [0, 0], sizes = [8, 32], strides = [1, 1]} : vector<8x128xf32> to vector<8x32xf32>
    %309 = vector.extract_strided_slice %307 {offsets = [0, 32], sizes = [8, 32], strides = [1, 1]} : vector<8x128xf32> to vector<8x32xf32>
    %310 = vector.extract_strided_slice %307 {offsets = [0, 96], sizes = [8, 32], strides = [1, 1]} : vector<8x128xf32> to vector<8x32xf32>
    %311 = vector.extract_strided_slice %300 {offsets = [0, 64], sizes = [8, 32], strides = [1, 1]} : vector<8x128xf32> to vector<8x32xf32>
    %312 = math.tanh %311 : vector<8x32xf32>
    %313 = arith.mulf %309, %274 : vector<8x32xf32>
    %314 = arith.mulf %308, %312 : vector<8x32xf32>
    %315 = arith.addf %313, %314 : vector<8x32xf32>
    %316 = math.tanh %315 : vector<8x32xf32>
    %317 = arith.mulf %310, %316 : vector<8x32xf32>
    %cst_81 = arith.constant dense<0.000000e+00> : vector<8x128xf32>
    %318 = tpu.matmul %317, %7, %cst_81 {dimension_numbers = #tpu.dot_dimension_numbers<[1], [0], [0], [1], [0, 0, 1, 1], [], []>} : vector<8x32xf32>, vector<32x128xf32>, vector<8x128xf32> -> vector<8x128xf32>
    %319 = arith.addf %297, %11 : vector<8x128xf32>
    %320 = arith.addf %318, %319 : vector<8x128xf32>
    %cst_82 = arith.constant 5.000000e-01 : f32
    %321 = vector.broadcast %cst_82 : f32 to vector<8x128xf32>
    %322 = arith.mulf %321, %320 : vector<8x128xf32>
    %323 = math.tanh %322 : vector<8x128xf32>
    %cst_83 = arith.constant 1.000000e+00 : f32
    %324 = vector.broadcast %cst_83 : f32 to vector<8x128xf32>
    %325 = arith.addf %324, %323 : vector<8x128xf32>
    %cst_84 = arith.constant 5.000000e-01 : f32
    %326 = vector.broadcast %cst_84 : f32 to vector<8x128xf32>
    %327 = arith.mulf %326, %325 : vector<8x128xf32>
    %328 = vector.extract_strided_slice %327 {offsets = [0, 0], sizes = [8, 32], strides = [1, 1]} : vector<8x128xf32> to vector<8x32xf32>
    %329 = vector.extract_strided_slice %327 {offsets = [0, 32], sizes = [8, 32], strides = [1, 1]} : vector<8x128xf32> to vector<8x32xf32>
    %330 = vector.extract_strided_slice %327 {offsets = [0, 96], sizes = [8, 32], strides = [1, 1]} : vector<8x128xf32> to vector<8x32xf32>
    %331 = vector.extract_strided_slice %320 {offsets = [0, 64], sizes = [8, 32], strides = [1, 1]} : vector<8x128xf32> to vector<8x32xf32>
    %332 = math.tanh %331 : vector<8x32xf32>
    %333 = arith.mulf %329, %294 : vector<8x32xf32>
    %334 = arith.mulf %328, %332 : vector<8x32xf32>
    %335 = arith.addf %333, %334 : vector<8x32xf32>
    %336 = math.tanh %335 : vector<8x32xf32>
    %337 = arith.mulf %330, %336 : vector<8x32xf32>
    %338 = tpu.concatenate %50, %91, %132, %173, %214, %255, %296, %337 in 0 : vector<8x32xf32>, vector<8x32xf32>, vector<8x32xf32>, vector<8x32xf32>, vector<8x32xf32>, vector<8x32xf32>, vector<8x32xf32>, vector<8x32xf32> -> vector<64x32xf32>
    %c0_85 = arith.constant 0 : index
    %c0_86 = arith.constant 0 : index
    %339 = vector.load %arg7[%c0_85, %c0_86] : memref<32x128xf32, #tpu.memory_space<vmem>>, vector<32x128xf32>
    %cst_87 = arith.constant dense<0.000000e+00> : vector<64x128xf32>
    %340 = tpu.matmul %338, %339, %cst_87 {dimension_numbers = #tpu.dot_dimension_numbers<[1], [0], [0], [1], [0, 0, 1, 1], [], []>} : vector<64x32xf32>, vector<32x128xf32>, vector<64x128xf32> -> vector<64x128xf32>
    %c0_88 = arith.constant 0 : index
    %c0_89 = arith.constant 0 : index
    %341 = vector.load %arg8[%c0_88, %c0_89] : memref<1x128xf32, #tpu.memory_space<vmem>>, vector<1x128xf32>
    %342 = vector.broadcast %341 : vector<1x128xf32> to vector<64x128xf32>
    %343 = arith.addf %340, %342 : vector<64x128xf32>
    %cst_90 = arith.constant 5.000000e-01 : f32
    %344 = vector.broadcast %cst_90 : f32 to vector<64x128xf32>
    %345 = arith.mulf %344, %343 : vector<64x128xf32>
    %346 = math.tanh %345 : vector<64x128xf32>
    %cst_91 = arith.constant 1.000000e+00 : f32
    %347 = vector.broadcast %cst_91 : f32 to vector<64x128xf32>
    %348 = arith.addf %347, %346 : vector<64x128xf32>
    %cst_92 = arith.constant 5.000000e-01 : f32
    %349 = vector.broadcast %cst_92 : f32 to vector<64x128xf32>
    %350 = arith.mulf %349, %348 : vector<64x128xf32>
    %c0_93 = arith.constant 0 : index
    %c0_94 = arith.constant 0 : index
    %351 = vector.load %arg9[%c0_93, %c0_94] : memref<64x128xf32, #tpu.memory_space<vmem>>, vector<64x128xf32>
    tpu.vector_store %arg9[%c0_93, %c0_94], %350 {strides = array<i32>} : memref<64x128xf32, #tpu.memory_space<vmem>>, vector<64x128xf32>,
    %c0_95 = arith.constant 0 : index
    %c0_96 = arith.constant 0 : index
    %c0_97 = arith.constant 0 : index
    %352 = vector.load %arg10[%c0_95, %c0_96, %c0_97] : memref<2x8x32xf32, #tpu.memory_space<vmem>>, vector<1x8x32xf32>
    %353 = vector.shape_cast %352 : vector<1x8x32xf32> to vector<8x32xf32>
    %354 = vector.shape_cast %317 : vector<8x32xf32> to vector<1x8x32xf32>
    tpu.vector_store %arg10[%c0_95, %c0_96, %c0_97], %354 {strides = array<i32>} : memref<2x8x32xf32, #tpu.memory_space<vmem>>, vector<1x8x32xf32>,
    %c1 = arith.constant 1 : index
    %c0_98 = arith.constant 0 : index
    %c0_99 = arith.constant 0 : index
    %355 = vector.load %arg10[%c1, %c0_98, %c0_99] : memref<2x8x32xf32, #tpu.memory_space<vmem>>, vector<1x8x32xf32>
    %356 = vector.shape_cast %355 : vector<1x8x32xf32> to vector<8x32xf32>
    %357 = vector.shape_cast %337 : vector<8x32xf32> to vector<1x8x32xf32>
    tpu.vector_store %arg10[%c1, %c0_98, %c0_99], %357 {strides = array<i32>} : memref<2x8x32xf32, #tpu.memory_space<vmem>>, vector<1x8x32xf32>,
    %c0_100 = arith.constant 0 : index
    %c0_101 = arith.constant 0 : index
    %c0_102 = arith.constant 0 : index
    %358 = vector.load %arg11[%c0_100, %c0_101, %c0_102] : memref<2x8x32xf32, #tpu.memory_space<vmem>>, vector<1x8x32xf32>
    %359 = vector.shape_cast %358 : vector<1x8x32xf32> to vector<8x32xf32>
    %360 = vector.shape_cast %315 : vector<8x32xf32> to vector<1x8x32xf32>
    tpu.vector_store %arg11[%c0_100, %c0_101, %c0_102], %360 {strides = array<i32>} : memref<2x8x32xf32, #tpu.memory_space<vmem>>, vector<1x8x32xf32>,
    %c1_103 = arith.constant 1 : index
    %c0_104 = arith.constant 0 : index
    %c0_105 = arith.constant 0 : index
    %361 = vector.load %arg11[%c1_103, %c0_104, %c0_105] : memref<2x8x32xf32, #tpu.memory_space<vmem>>, vector<1x8x32xf32>
    %362 = vector.shape_cast %361 : vector<1x8x32xf32> to vector<8x32xf32>
    %363 = vector.shape_cast %335 : vector<8x32xf32> to vector<1x8x32xf32>
    tpu.vector_store %arg11[%c1_103, %c0_104, %c0_105], %363 {strides = array<i32>} : memref<2x8x32xf32, #tpu.memory_space<vmem>>, vector<1x8x32xf32>,
    return
  }
}

</mosaic_0001>

<llo_original>
// kernel: tpu_custom_call.1
$region0: #{tpu_custom_call.1}
  #allocation0 [shape = 'u32[]', space=smem, size = 0x4, offset = 0x4, fixed_abs, tag = 'smem constant byte address 0x4 - core index']
  #allocation1 [shape = 'u32[144,128]{1,0:T(1,128)}', space=vmem, size = 0x12000, scoped, tag = 'internal scratch']
  %s0 = inlined_call_operand.vmem [shape: f32[64,32], index: 0, kind: input, shape index: {}]
  %s1 = inlined_call_operand.vmem [shape: f32[32,128], index: 1, kind: input, shape index: {}]
  %s2 = inlined_call_operand.vmem [shape: f32[32,128], index: 2, kind: input, shape index: {}]
  %s3 = inlined_call_operand.vmem [shape: f32[1,128], index: 3, kind: input, shape index: {}]
  %s4 = inlined_call_operand.vmem [shape: f32[32,128], index: 4, kind: input, shape index: {}]
  %s5 = inlined_call_operand.hbm [shape: f32[32,128], index: 5, kind: input, shape index: {}]
  %s6 = inlined_call_operand.vmem [shape: f32[1,128], index: 6, kind: input, shape index: {}]
  %s7 = inlined_call_operand.hbm [shape: f32[32,128], index: 7, kind: input, shape index: {}]
  %s8 = inlined_call_operand.vmem [shape: f32[1,128], index: 8, kind: input, shape index: {}]
  %s9 = inlined_call_operand.hbm [shape: f32[64,128], index: 9, kind: output, shape index: {0}]
  %s10 = inlined_call_operand.hbm [shape: f32[2,8,32], index: 10, kind: output, shape index: {1}]
  %s11 = inlined_call_operand.hbm [shape: f32[2,8,32], index: 11, kind: output, shape index: {2}]
  %12 = xla_tuple %s9, %s10, %s11
  %s13 = sld [smem:[#allocation0]]
  $region70: #{tpu_custom_call.1} parent=0
    _
  %s15 = ssub.s32 1, %s13
  %s16 = scalar_select 0, %s15, %s13
  $region1: #{tpu_custom_call.1} parent=0
    #allocation2 [shape = 'u8[16384]{0}', space=vmem, size = 0x4000, scoped, tag = 'input window, operand 5, single buffered']
    #allocation3 [shape = 's32[1]{0}', space=sflag, size = 0x4, scoped, tag = 'scoped memory for tpu_custom_call.1']
    #allocation4 [shape = 's32[1]{0}', space=sflag, size = 0x4, scoped, tag = 'scoped memory for tpu_custom_call.1']
    #allocation5 [shape = 'u8[16384]{0}', space=vmem, size = 0x4000, scoped, tag = 'input window, operand 7, single buffered']
    #allocation6 [shape = 's32[1]{0}', space=sflag, size = 0x4, scoped, tag = 'scoped memory for tpu_custom_call.1']
    #allocation7 [shape = 'u8[32768]{0}', space=vmem, size = 0x8000, scoped, tag = 'output window, operand 0, single buffered']
    #allocation8 [shape = 'u8[8192]{0}', space=vmem, size = 0x2000, scoped, tag = 'output window, operand 1, single buffered']
    #allocation9 [shape = 's32[1]{0}', space=sflag, size = 0x4, scoped, tag = 'scoped memory for tpu_custom_call.1']
    #allocation10 [shape = 'u8[8192]{0}', space=vmem, size = 0x2000, scoped, tag = 'output window, operand 2, single buffered']
    %17 = vsyncpa [#allocation3], 0
    %18 = vsyncpa [#allocation6], 0
    %19 = vsyncpa [#allocation4], 0
    %20 = vsyncpa [#allocation9], 0
    // Predicated region
    $region2: #{tpu_custom_call.1} parent=1 // pred_check
      _
    $region3: #{tpu_custom_call.1} parent=1 // pred_check_branch
      %22 = sbr.rel (0) target = $region5
    $region4: #{tpu_custom_call.1} parent=1 // pred_region
      _
    $region5: #{tpu_custom_call.1} parent=1 // pred_fallthru
      _
    // Predicated region
    $region6: #{tpu_custom_call.1} parent=1 // pred_check
      _
    $region7: #{tpu_custom_call.1} parent=1 // pred_check_branch
      %24 = sbr.rel (0) target = $region9
    $region8: #{tpu_custom_call.1} parent=1 // pred_region
      _
    $region9: #{tpu_custom_call.1} parent=1 // pred_fallthru
      _
    // Predicated region
    $region10: #{tpu_custom_call.1} parent=1 // pred_check
      _
    $region11: #{tpu_custom_call.1} parent=1 // pred_check_branch
      %26 = sbr.rel (0) target = $region13
    $region12: #{tpu_custom_call.1} parent=1 // pred_region
      _
    $region13: #{tpu_custom_call.1} parent=1 // pred_fallthru
      _
    // Predicated region
    $region14: #{tpu_custom_call.1} parent=1 // pred_check
      _
    $region15: #{tpu_custom_call.1} parent=1 // pred_check_branch
      %28 = sbr.rel (0) target = $region17
    $region16: #{tpu_custom_call.1} parent=1 // pred_region
      _
    $region17: #{tpu_custom_call.1} parent=1 // pred_fallthru
      _
    // Predicated region
    $region18: #{tpu_custom_call.1} parent=1 // pred_check
      _
    $region19: #{tpu_custom_call.1} parent=1 // pred_check_branch
      %30 = sbr.rel (0) target = $region21
    $region20: #{tpu_custom_call.1} parent=1 // pred_region
      _
    $region21: #{tpu_custom_call.1} parent=1 // pred_fallthru
      _
    // Predicated region
    $region22: #{tpu_custom_call.1} parent=1 // pred_check
      _
    $region23: #{tpu_custom_call.1} parent=1 // pred_check_branch
      %32 = sbr.rel (0) target = $region25
    $region24: #{tpu_custom_call.1} parent=1 // pred_region
      %s34 = ssub.s32 512, 512
      %35 = vsyncadd [#allocation3], %s34
      %s36 = sshll.u32 [#allocation2], 4
      %s37 = int_to_ptr.vmem [resolvable:$true] %s36
      %42 = dma.hbm_to_vmem [thread:$0]  %s5, 512, %s37, [#allocation3], 128, 128, 8
    $region25: #{tpu_custom_call.1} parent=1 // pred_fallthru
      _
    // Predicated region
    $region26: #{tpu_custom_call.1} parent=1 // pred_check
      _
    $region27: #{tpu_custom_call.1} parent=1 // pred_check_branch
      %44 = sbr.rel (0) target = $region29
    $region28: #{tpu_custom_call.1} parent=1 // pred_region
      _
    $region29: #{tpu_custom_call.1} parent=1 // pred_fallthru
      _
    // Predicated region
    $region30: #{tpu_custom_call.1} parent=1 // pred_check
      _
    $region31: #{tpu_custom_call.1} parent=1 // pred_check_branch
      %46 = sbr.rel (0) target = $region33
    $region32: #{tpu_custom_call.1} parent=1 // pred_region
      %s48 = ssub.s32 512, 512
      %49 = vsyncadd [#allocation6], %s48
      %s50 = sshll.u32 [#allocation5], 4
      %s51 = int_to_ptr.vmem [resolvable:$true] %s50
      %56 = dma.hbm_to_vmem [thread:$0]  %s7, 512, %s51, [#allocation6], 128, 128, 8
    $region33: #{tpu_custom_call.1} parent=1 // pred_fallthru
      _
    // Predicated region
    $region34: #{tpu_custom_call.1} parent=1 // pred_check
      _
    $region35: #{tpu_custom_call.1} parent=1 // pred_check_branch
      %58 = sbr.rel (0) target = $region37
    $region36: #{tpu_custom_call.1} parent=1 // pred_region
      _
    $region37: #{tpu_custom_call.1} parent=1 // pred_fallthru
      _
    // Predicated region
    $region38: #{tpu_custom_call.1} parent=1 // pred_check
      _
    $region39: #{tpu_custom_call.1} parent=1 // pred_check_branch
      %60 = sbr.rel (0) target = $region41
    $region40: #{tpu_custom_call.1} parent=1 // pred_region
      %61 = dma.done [#allocation3], 512
    $region41: #{tpu_custom_call.1} parent=1 // pred_fallthru
      _
    // Predicated region
    $region42: #{tpu_custom_call.1} parent=1 // pred_check
      _
    $region43: #{tpu_custom_call.1} parent=1 // pred_check_branch
      %63 = sbr.rel (0) target = $region45
    $region44: #{tpu_custom_call.1} parent=1 // pred_region
      %64 = dma.done [#allocation6], 512
    $region45: #{tpu_custom_call.1} parent=1 // pred_fallthru
      _
    %v65 = vld [vmem:[%s0] sm:$0xff]
    %v66 = vld [vmem:[%s0 + $0x8] sm:$0xff]
    %v67 = vld [vmem:[%s0 + $0x10] sm:$0xff]
    %v68 = vld [vmem:[%s0 + $0x18] sm:$0xff]
    %v69 = vld [vmem:[%s0 + $0x20] sm:$0xff]
    %v70 = vld [vmem:[%s0 + $0x28] sm:$0xff]
    %v71 = vld [vmem:[%s0 + $0x30] sm:$0xff]
    %v72 = vld [vmem:[%s0 + $0x38] sm:$0xff]
    %v73 = vld [vmem:[%s1] sm:$0xff]
    %v74 = vld [vmem:[%s1 + $0x8] sm:$0xff]
    %v75 = vld [vmem:[%s1 + $0x10] sm:$0xff]
    %v76 = vld [vmem:[%s1 + $0x18] sm:$0xff]
    %v77 = vld [vmem:[%s3] sm:$0x1]
    %v79 = vlaneseq
    %v80 = vshrl.u32 %v79, 7
    %v81 = vsub.s32 0, %v80
    %v82 = vrot.slane %v77, %v81
    %vm84 = vcmask 261120
    %v86 = vsel %vm84, %v65, 0
    %v89 = vsel %vm84, %v66, 0
    %v92 = vsel %vm84, %v67, 0
    %v95 = vsel %vm84, %v68, 0
    %v98 = vsel %vm84, %v69, 0
    %v101 = vsel %vm84, %v70, 0
    %v104 = vsel %vm84, %v71, 0
    %v107 = vsel %vm84, %v72, 0
    %109 = vmatprep.subr.mxu0 0.0
    %110 = vmatpush1.msra.mxu0 %v73
    %111 = vmatprep.subr.mxu0 0.0
    %112 = vmatpush1.msra.mxu0 %v74
    %113 = vmatprep.subr.mxu0 0.0
    %114 = vmatpush1.msra.mxu0 %v75
    %115 = vmatprep.subr.mxu0 0.0
    %116 = vmatpush1.msra.mxu0 %v76
    %117 = vmatprep.subr.mxu0 0.0
    %118 = vmatpush1.msra.mxu0 0.0
    %119 = vmatprep.subr.mxu0 0.0
    %120 = vmatpush1.msra.mxu0 0.0
    %121 = vmatprep.subr.mxu0 0.0
    %122 = vmatpush1.msra.mxu0 0.0
    %123 = vmatprep.subr.mxu0 0.0
    %124 = vmatpush1.msra.mxu0 0.0
    %125 = vmatprep.subr.mxu0 0.0
    %126 = vmatpush1.msra.mxu0 0.0
    %127 = vmatprep.subr.mxu0 0.0
    %128 = vmatpush1.msra.mxu0 0.0
    %129 = vmatprep.subr.mxu0 0.0
    %130 = vmatpush1.msra.mxu0 0.0
    %131 = vmatprep.subr.mxu0 0.0
    %132 = vmatpush1.msra.mxu0 0.0
    %133 = vmatprep.subr.mxu0 0.0
    %134 = vmatpush1.msra.mxu0 0.0
    %135 = vmatprep.subr.mxu0 0.0
    %136 = vmatpush1.msra.mxu0 0.0
    %137 = vmatprep.subr.mxu0 0.0
    %138 = vmatpush1.msra.mxu0 0.0
    %139 = vmatprep.subr.mxu0 0.0
    %140 = vmatpush1.msra.mxu0 0.0
    %141 = vmatprep.subr.mxu0 0.0
    %142 = vmatpush1.msra.mxu0 0.0
    %143 = vmatprep.subr.mxu0 0.0
    %144 = vmatpush1.msra.mxu0 0.0
    %145 = vmatprep.subr.mxu0 0.0
    %146 = vmatpush1.msra.mxu0 0.0
    %147 = vmatprep.subr.mxu0 0.0
    %148 = vmatpush1.msra.mxu0 0.0
    %149 = vmatprep.subr.mxu0 0.0
    %150 = vmatpush1.msra.mxu0 0.0
    %151 = vmatprep.subr.mxu0 0.0
    %152 = vmatpush1.msra.mxu0 0.0
    %153 = vmatprep.subr.mxu0 0.0
    %154 = vmatpush1.msra.mxu0 0.0
    %155 = vmatprep.subr.mxu0 0.0
    %156 = vmatpush1.msra.mxu0 0.0
    %157 = vmatprep.subr.mxu0 0.0
    %158 = vmatpush1.msra.mxu0 0.0
    %159 = vmatprep.subr.mxu0 0.0
    %160 = vmatpush1.msra.mxu0 0.0
    %161 = vmatprep.subr.mxu0 0.0
    %162 = vmatpush1.msra.mxu0 0.0
    %163 = vmatprep.subr.mxu0 0.0
    %164 = vmatpush1.msra.mxu0 0.0
    %165 = vmatprep.subr.mxu0 0.0
    %166 = vmatpush1.msra.mxu0 0.0
    %167 = vmatprep.subr.mxu0 0.0
    %168 = vmatpush1.msra.mxu0 0.0
    %169 = vmatprep.subr.mxu0 0.0
    %170 = vmatpush1.msra.mxu0 0.0
    %171 = vmatprep.subr.mxu0 0.0
    %172 = vmatpush1.msra.mxu0 0.0
    %173 = vmatprep.mubr.f32.mxu0 0.0
    %174 = vmatmul.mubr.f32.gmra.mrb[0].mxu0 %v86
    %v175 = vpop.f32.mrb[0].mxu0
    %v176 = vadd.f32 %v82, %v175
    %v177 = vpop.f32.mrb[0].mxu0
    %178 = vmatprep.mubr.f32.mxu0 0.0
    %179 = vmatmul.mubr.f32.gmra.mrb[0].mxu0 %v89
    %v180 = vpop.f32.mrb[0].mxu0
    %v181 = vadd.f32 %v82, %v180
    %v182 = vpop.f32.mrb[0].mxu0
    %183 = vmatprep.mubr.f32.mxu0 0.0
    %184 = vmatmul.mubr.f32.gmra.mrb[0].mxu0 %v92
    %v185 = vpop.f32.mrb[0].mxu0
    %v186 = vadd.f32 %v82, %v185
    %v187 = vpop.f32.mrb[0].mxu0
    %188 = vmatprep.mubr.f32.mxu0 0.0
    %189 = vmatmul.mubr.f32.gmra.mrb[0].mxu0 %v95
    %v190 = vpop.f32.mrb[0].mxu0
    %v191 = vadd.f32 %v82, %v190
    %v192 = vpop.f32.mrb[0].mxu0
    %193 = vmatprep.mubr.f32.mxu0 0.0
    %194 = vmatmul.mubr.f32.gmra.mrb[0].mxu0 %v98
    %v195 = vpop.f32.mrb[0].mxu0
    %v196 = vadd.f32 %v82, %v195
    %v197 = vpop.f32.mrb[0].mxu0
    %198 = vmatprep.mubr.f32.mxu0 0.0
    %199 = vmatmul.mubr.f32.gmra.mrb[0].mxu0 %v101
    %v200 = vpop.f32.mrb[0].mxu0
    %v201 = vadd.f32 %v82, %v200
    %v202 = vpop.f32.mrb[0].mxu0
    %203 = vmatprep.mubr.f32.mxu0 0.0
    %204 = vmatmul.mubr.f32.gmra.mrb[0].mxu0 %v104
    %v205 = vpop.f32.mrb[0].mxu0
    %v206 = vadd.f32 %v82, %v205
    %v207 = vpop.f32.mrb[0].mxu0
    %208 = vmatprep.mubr.f32.mxu0 0.0
    %209 = vmatmul.mubr.f32.gmra.mrb[0].mxu0 %v107
    %v210 = vpop.f32.mrb[0].mxu0
    %v211 = vadd.f32 %v82, %v210
    %v212 = vpop.f32.mrb[0].mxu0
    %213 = vdwg.mxu0
    %v214 = vld [vmem:[%s2] sm:$0xff]
    %v215 = vld [vmem:[%s2 + $0x8] sm:$0xff]
    %v216 = vld [vmem:[%s2 + $0x10] sm:$0xff]
    %v217 = vld [vmem:[%s2 + $0x18] sm:$0xff]
    %v218 = vld [vmem:[%s4] sm:$0xff]
    %v219 = vld [vmem:[%s4 + $0x8] sm:$0xff]
    %v220 = vld [vmem:[%s4 + $0x10] sm:$0xff]
    %v221 = vld [vmem:[%s4 + $0x18] sm:$0xff]
    %v222 = vld [vmem:[#allocation2] sm:$0xff]
    %v223 = vld [vmem:[#allocation2 + $0x8] sm:$0xff]
    %v224 = vld [vmem:[#allocation2 + $0x10] sm:$0xff]
    %v225 = vld [vmem:[#allocation2 + $0x18] sm:$0xff]
    %v226 = vld [vmem:[%s6] sm:$0x1]
    %v228 = vlaneseq
    %v229 = vshrl.u32 %v228, 7
    %v230 = vsub.s32 0, %v229
    %v231 = vrot.slane %v226, %v230
    %v233 = vmul.f32 %v176, 0.5
    %v234 = vtanh.pop %v233
    %v235 = vadd.f32 %v234, 1.0
    %v236 = vmul.f32 %v235, 0.5
    %v237 = vtanh.pop %v176
    %v238 = vmul.f32 %v236, 0.0
    %240 = vrot.lane.b32.xlu0 %v237, 64
    %v241 = vpop.permute.xlu0 %240
    %v243 = vmul.f32 %v236, %v241
    %245 = vrot.lane.b32.xlu0 %v243, 32
    %v246 = vpop.permute.xlu0 %245
    %v248 = vadd.f32 %v238, %v246
    %v249 = vtanh.pop %v248
    %251 = vrot.lane.b32.xlu0 %v249, 64
    %v252 = vpop.permute.xlu0 %251
    %v254 = vmul.f32 %v236, %v252
    %256 = vrot.lane.b32.xlu0 %v254, 32
    %v257 = vpop.permute.xlu0 %256
    %v258 = vsel %vm84, %v257, 0
    %260 = vmatprep.subr.mxu0 0.0
    %261 = vmatpush1.msra.mxu0 %v218
    %262 = vmatprep.subr.mxu0 0.0
    %263 = vmatpush1.msra.mxu0 %v219
    %264 = vmatprep.subr.mxu0 0.0
    %265 = vmatpush1.msra.mxu0 %v220
    %266 = vmatprep.subr.mxu0 0.0
    %267 = vmatpush1.msra.mxu0 %v221
    %268 = vmatprep.subr.mxu0 0.0
    %269 = vmatpush1.msra.mxu0 0.0
    %270 = vmatprep.subr.mxu0 0.0
    %271 = vmatpush1.msra.mxu0 0.0
    %272 = vmatprep.subr.mxu0 0.0
    %273 = vmatpush1.msra.mxu0 0.0
    %274 = vmatprep.subr.mxu0 0.0
    %275 = vmatpush1.msra.mxu0 0.0
    %276 = vmatprep.subr.mxu0 0.0
    %277 = vmatpush1.msra.mxu0 0.0
    %278 = vmatprep.subr.mxu0 0.0
    %279 = vmatpush1.msra.mxu0 0.0
    %280 = vmatprep.subr.mxu0 0.0
    %281 = vmatpush1.msra.mxu0 0.0
    %282 = vmatprep.subr.mxu0 0.0
    %283 = vmatpush1.msra.mxu0 0.0
    %284 = vmatprep.subr.mxu0 0.0
    %285 = vmatpush1.msra.mxu0 0.0
    %286 = vmatprep.subr.mxu0 0.0
    %287 = vmatpush1.msra.mxu0 0.0
    %288 = vmatprep.subr.mxu0 0.0
    %289 = vmatpush1.msra.mxu0 0.0
    %290 = vmatprep.subr.mxu0 0.0
    %291 = vmatpush1.msra.mxu0 0.0
    %292 = vmatprep.subr.mxu0 0.0
    %293 = vmatpush1.msra.mxu0 0.0
    %294 = vmatprep.subr.mxu0 0.0
    %295 = vmatpush1.msra.mxu0 0.0
    %296 = vmatprep.subr.mxu0 0.0
    %297 = vmatpush1.msra.mxu0 0.0
    %298 = vmatprep.subr.mxu0 0.0
    %299 = vmatpush1.msra.mxu0 0.0
    %300 = vmatprep.subr.mxu0 0.0
    %301 = vmatpush1.msra.mxu0 0.0
    %302 = vmatprep.subr.mxu0 0.0
    %303 = vmatpush1.msra.mxu0 0.0
    %304 = vmatprep.subr.mxu0 0.0
    %305 = vmatpush1.msra.mxu0 0.0
    %306 = vmatprep.subr.mxu0 0.0
    %307 = vmatpush1.msra.mxu0 0.0
    %308 = vmatprep.subr.mxu0 0.0
    %309 = vmatpush1.msra.mxu0 0.0
    %310 = vmatprep.subr.mxu0 0.0
    %311 = vmatpush1.msra.mxu0 0.0
    %312 = vmatprep.subr.mxu0 0.0
    %313 = vmatpush1.msra.mxu0 0.0
    %314 = vmatprep.subr.mxu0 0.0
    %315 = vmatpush1.msra.mxu0 0.0
    %316 = vmatprep.subr.mxu0 0.0
    %317 = vmatpush1.msra.mxu0 0.0
    %318 = vmatprep.subr.mxu0 0.0
    %319 = vmatpush1.msra.mxu0 0.0
    %320 = vmatprep.subr.mxu0 0.0
    %321 = vmatpush1.msra.mxu0 0.0
    %322 = vmatprep.subr.mxu0 0.0
    %323 = vmatpush1.msra.mxu0 0.0
    %324 = vmatprep.mubr.f32.mxu0 0.0
    %325 = vmatmul.mubr.f32.gmra.mrb[0].mxu0 %v258
    %v326 = vpop.f32.mrb[0].mxu0
    %v327 = vadd.f32 %v231, %v326
    %v328 = vpop.f32.mrb[0].mxu0
    %329 = vdwg.mxu0
    %v330 = vmul.f32 %v327, 0.5
    %v331 = vtanh.pop %v330
    %v332 = vadd.f32 %v331, 1.0
    %v333 = vmul.f32 %v332, 0.5
    %v334 = vtanh.pop %v327
    %v335 = vmul.f32 %v333, 0.0
    %337 = vrot.lane.b32.xlu0 %v334, 64
    %v338 = vpop.permute.xlu0 %337
    %v340 = vmul.f32 %v333, %v338
    %342 = vrot.lane.b32.xlu0 %v340, 32
    %v343 = vpop.permute.xlu0 %342
    %v345 = vadd.f32 %v335, %v343
    %v346 = vtanh.pop %v345
    %348 = vrot.lane.b32.xlu0 %v346, 64
    %v349 = vpop.permute.xlu0 %348
    %v351 = vmul.f32 %v333, %v349
    %352 = vmatprep.subr.mxu0 0.0
    %353 = vmatpush1.msra.mxu0 %v214
    %354 = vmatprep.subr.mxu0 0.0
    %355 = vmatpush1.msra.mxu0 %v215
    %356 = vmatprep.subr.mxu0 0.0
    %357 = vmatpush1.msra.mxu0 %v216
    %358 = vmatprep.subr.mxu0 0.0
    %359 = vmatpush1.msra.mxu0 %v217
    %360 = vmatprep.subr.mxu0 0.0
    %361 = vmatpush1.msra.mxu0 0.0
    %362 = vmatprep.subr.mxu0 0.0
    %363 = vmatpush1.msra.mxu0 0.0
    %364 = vmatprep.subr.mxu0 0.0
    %365 = vmatpush1.msra.mxu0 0.0
    %366 = vmatprep.subr.mxu0 0.0
    %367 = vmatpush1.msra.mxu0 0.0
    %368 = vmatprep.subr.mxu0 0.0
    %369 = vmatpush1.msra.mxu0 0.0
    %370 = vmatprep.subr.mxu0 0.0
    %371 = vmatpush1.msra.mxu0 0.0
    %372 = vmatprep.subr.mxu0 0.0
    %373 = vmatpush1.msra.mxu0 0.0
    %374 = vmatprep.subr.mxu0 0.0
    %375 = vmatpush1.msra.mxu0 0.0
    %376 = vmatprep.subr.mxu0 0.0
    %377 = vmatpush1.msra.mxu0 0.0
    %378 = vmatprep.subr.mxu0 0.0
    %379 = vmatpush1.msra.mxu0 0.0
    %380 = vmatprep.subr.mxu0 0.0
    %381 = vmatpush1.msra.mxu0 0.0
    %382 = vmatprep.subr.mxu0 0.0
    %383 = vmatpush1.msra.mxu0 0.0
    %384 = vmatprep.subr.mxu0 0.0
    %385 = vmatpush1.msra.mxu0 0.0
    %386 = vmatprep.subr.mxu0 0.0
    %387 = vmatpush1.msra.mxu0 0.0
    %388 = vmatprep.subr.mxu0 0.0
    %389 = vmatpush1.msra.mxu0 0.0
    %390 = vmatprep.subr.mxu0 0.0
    %391 = vmatpush1.msra.mxu0 0.0
    %392 = vmatprep.subr.mxu0 0.0
    %393 = vmatpush1.msra.mxu0 0.0
    %394 = vmatprep.subr.mxu0 0.0
    %395 = vmatpush1.msra.mxu0 0.0
    %396 = vmatprep.subr.mxu0 0.0
    %397 = vmatpush1.msra.mxu0 0.0
    %398 = vmatprep.subr.mxu0 0.0
    %399 = vmatpush1.msra.mxu0 0.0
    %400 = vmatprep.subr.mxu0 0.0
    %401 = vmatpush1.msra.mxu0 0.0
    %402 = vmatprep.subr.mxu0 0.0
    %403 = vmatpush1.msra.mxu0 0.0
    %404 = vmatprep.subr.mxu0 0.0
    %405 = vmatpush1.msra.mxu0 0.0
    %406 = vmatprep.subr.mxu0 0.0
    %407 = vmatpush1.msra.mxu0 0.0
    %408 = vmatprep.subr.mxu0 0.0
    %409 = vmatpush1.msra.mxu0 0.0
    %410 = vmatprep.subr.mxu0 0.0
    %411 = vmatpush1.msra.mxu0 0.0
    %412 = vmatprep.subr.mxu0 0.0
    %413 = vmatpush1.msra.mxu0 0.0
    %414 = vmatprep.subr.mxu0 0.0
    %415 = vmatpush1.msra.mxu0 0.0
    %416 = vmatprep.mubr.f32.mxu0 0.0
    %417 = vmatmul.mubr.f32.gmra.mrb[0].mxu0 %v258
    %v418 = vpop.f32.mrb[0].mxu0
    %v419 = vadd.f32 0.0, %v418
    %v420 = vpop.f32.mrb[0].mxu0
    %421 = vdwg.mxu0
    %v422 = vadd.f32 %v181, %v419
    %v423 = vmul.f32 %v422, 0.5
    %v424 = vtanh.pop %v423
    %v425 = vadd.f32 %v424, 1.0
    %v426 = vmul.f32 %v425, 0.5
    %v427 = vtanh.pop %v422
    %v428 = vmul.f32 %v426, %v248
    %430 = vrot.lane.b32.xlu0 %v427, 64
    %v431 = vpop.permute.xlu0 %430
    %v433 = vmul.f32 %v426, %v431
    %435 = vrot.lane.b32.xlu0 %v433, 32
    %v436 = vpop.permute.xlu0 %435
    %v438 = vadd.f32 %v428, %v436
    %v439 = vtanh.pop %v438
    %441 = vrot.lane.b32.xlu0 %v439, 64
    %v442 = vpop.permute.xlu0 %441
    %v444 = vmul.f32 %v426, %v442
    %446 = vrot.lane.b32.xlu0 %v351, 32
    %v447 = vpop.permute.xlu0 %446
    %v448 = vsel %vm84, %v447, 0
    %450 = vmatprep.subr.mxu0 0.0
    %451 = vmatpush1.msra.mxu0 %v222
    %452 = vmatprep.subr.mxu0 0.0
    %453 = vmatpush1.msra.mxu0 %v223
    %454 = vmatprep.subr.mxu0 0.0
    %455 = vmatpush1.msra.mxu0 %v224
    %456 = vmatprep.subr.mxu0 0.0
    %457 = vmatpush1.msra.mxu0 %v225
    %458 = vmatprep.subr.mxu0 0.0
    %459 = vmatpush1.msra.mxu0 0.0
    %460 = vmatprep.subr.mxu0 0.0
    %461 = vmatpush1.msra.mxu0 0.0
    %462 = vmatprep.subr.mxu0 0.0
    %463 = vmatpush1.msra.mxu0 0.0
    %464 = vmatprep.subr.mxu0 0.0
    %465 = vmatpush1.msra.mxu0 0.0
    %466 = vmatprep.subr.mxu0 0.0
    %467 = vmatpush1.msra.mxu0 0.0
    %468 = vmatprep.subr.mxu0 0.0
    %469 = vmatpush1.msra.mxu0 0.0
    %470 = vmatprep.subr.mxu0 0.0
    %471 = vmatpush1.msra.mxu0 0.0
    %472 = vmatprep.subr.mxu0 0.0
    %473 = vmatpush1.msra.mxu0 0.0
    %474 = vmatprep.subr.mxu0 0.0
    %475 = vmatpush1.msra.mxu0 0.0
    %476 = vmatprep.subr.mxu0 0.0
    %477 = vmatpush1.msra.mxu0 0.0
    %478 = vmatprep.subr.mxu0 0.0
    %479 = vmatpush1.msra.mxu0 0.0
    %480 = vmatprep.subr.mxu0 0.0
    %481 = vmatpush1.msra.mxu0 0.0
    %482 = vmatprep.subr.mxu0 0.0
    %483 = vmatpush1.msra.mxu0 0.0
    %484 = vmatprep.subr.mxu0 0.0
    %485 = vmatpush1.msra.mxu0 0.0
    %486 = vmatprep.subr.mxu0 0.0
    %487 = vmatpush1.msra.mxu0 0.0
    %488 = vmatprep.subr.mxu0 0.0
    %489 = vmatpush1.msra.mxu0 0.0
    %490 = vmatprep.subr.mxu0 0.0
    %491 = vmatpush1.msra.mxu0 0.0
    %492 = vmatprep.subr.mxu0 0.0
    %493 = vmatpush1.msra.mxu0 0.0
    %494 = vmatprep.subr.mxu0 0.0
    %495 = vmatpush1.msra.mxu0 0.0
    %496 = vmatprep.subr.mxu0 0.0
    %497 = vmatpush1.msra.mxu0 0.0
    %498 = vmatprep.subr.mxu0 0.0
    %499 = vmatpush1.msra.mxu0 0.0
    %500 = vmatprep.subr.mxu0 0.0
    %501 = vmatpush1.msra.mxu0 0.0
    %502 = vmatprep.subr.mxu0 0.0
    %503 = vmatpush1.msra.mxu0 0.0
    %504 = vmatprep.subr.mxu0 0.0
    %505 = vmatpush1.msra.mxu0 0.0
    %506 = vmatprep.subr.mxu0 0.0
    %507 = vmatpush1.msra.mxu0 0.0
    %508 = vmatprep.subr.mxu0 0.0
    %509 = vmatpush1.msra.mxu0 0.0
    %510 = vmatprep.subr.mxu0 0.0
    %511 = vmatpush1.msra.mxu0 0.0
    %512 = vmatprep.subr.mxu0 0.0
    %513 = vmatpush1.msra.mxu0 0.0
    %514 = vmatprep.mubr.f32.mxu0 0.0
    %515 = vmatmul.mubr.f32.gmra.mrb[0].mxu0 %v448
    %v516 = vpop.f32.mrb[0].mxu0
    %v517 = vadd.f32 %v231, %v516
    %v518 = vpop.f32.mrb[0].mxu0
    %519 = vdwg.mxu0
    %521 = vrot.lane.b32.xlu0 %v444, 32
    %v522 = vpop.permute.xlu0 %521
    %v523 = vsel %vm84, %v522, 0
    %525 = vmatprep.subr.mxu0 0.0
    %526 = vmatpush1.msra.mxu0 %v218
    %527 = vmatprep.subr.mxu0 0.0
    %528 = vmatpush1.msra.mxu0 %v219
    %529 = vmatprep.subr.mxu0 0.0
    %530 = vmatpush1.msra.mxu0 %v220
    %531 = vmatprep.subr.mxu0 0.0
    %532 = vmatpush1.msra.mxu0 %v221
    %533 = vmatprep.subr.mxu0 0.0
    %534 = vmatpush1.msra.mxu0 0.0
    %535 = vmatprep.subr.mxu0 0.0
    %536 = vmatpush1.msra.mxu0 0.0
    %537 = vmatprep.subr.mxu0 0.0
    %538 = vmatpush1.msra.mxu0 0.0
    %539 = vmatprep.subr.mxu0 0.0
    %540 = vmatpush1.msra.mxu0 0.0
    %541 = vmatprep.subr.mxu0 0.0
    %542 = vmatpush1.msra.mxu0 0.0
    %543 = vmatprep.subr.mxu0 0.0
    %544 = vmatpush1.msra.mxu0 0.0
    %545 = vmatprep.subr.mxu0 0.0
    %546 = vmatpush1.msra.mxu0 0.0
    %547 = vmatprep.subr.mxu0 0.0
    %548 = vmatpush1.msra.mxu0 0.0
    %549 = vmatprep.subr.mxu0 0.0
    %550 = vmatpush1.msra.mxu0 0.0
    %551 = vmatprep.subr.mxu0 0.0
    %552 = vmatpush1.msra.mxu0 0.0
    %553 = vmatprep.subr.mxu0 0.0
    %554 = vmatpush1.msra.mxu0 0.0
    %555 = vmatprep.subr.mxu0 0.0
    %556 = vmatpush1.msra.mxu0 0.0
    %557 = vmatprep.subr.mxu0 0.0
    %558 = vmatpush1.msra.mxu0 0.0
    %559 = vmatprep.subr.mxu0 0.0
    %560 = vmatpush1.msra.mxu0 0.0
    %561 = vmatprep.subr.mxu0 0.0
    %562 = vmatpush1.msra.mxu0 0.0
    %563 = vmatprep.subr.mxu0 0.0
    %564 = vmatpush1.msra.mxu0 0.0
    %565 = vmatprep.subr.mxu0 0.0
    %566 = vmatpush1.msra.mxu0 0.0
    %567 = vmatprep.subr.mxu0 0.0
    %568 = vmatpush1.msra.mxu0 0.0
    %569 = vmatprep.subr.mxu0 0.0
    %570 = vmatpush1.msra.mxu0 0.0
    %571 = vmatprep.subr.mxu0 0.0
    %572 = vmatpush1.msra.mxu0 0.0
    %573 = vmatprep.subr.mxu0 0.0
    %574 = vmatpush1.msra.mxu0 0.0
    %575 = vmatprep.subr.mxu0 0.0
    %576 = vmatpush1.msra.mxu0 0.0
    %577 = vmatprep.subr.mxu0 0.0
    %578 = vmatpush1.msra.mxu0 0.0
    %579 = vmatprep.subr.mxu0 0.0
    %580 = vmatpush1.msra.mxu0 0.0
    %581 = vmatprep.subr.mxu0 0.0
    %582 = vmatpush1.msra.mxu0 0.0
    %583 = vmatprep.subr.mxu0 0.0
    %584 = vmatpush1.msra.mxu0 0.0
    %585 = vmatprep.subr.mxu0 0.0
    %586 = vmatpush1.msra.mxu0 0.0
    %587 = vmatprep.subr.mxu0 0.0
    %588 = vmatpush1.msra.mxu0 0.0
    %589 = vmatprep.mubr.f32.mxu0 0.0
    %590 = vmatmul.mubr.f32.gmra.mrb[0].mxu0 %v523
    %v591 = vpop.f32.mrb[0].mxu0
    %v592 = vadd.f32 %v517, %v591
    %v593 = vpop.f32.mrb[0].mxu0
    %594 = vdwg.mxu0
    %v595 = vmul.f32 %v592, 0.5
    %v596 = vtanh.pop %v595
    %v597 = vadd.f32 %v596, 1.0
    %v598 = vmul.f32 %v597, 0.5
    %v599 = vtanh.pop %v592
    %v600 = vmul.f32 %v598, %v345
    %602 = vrot.lane.b32.xlu0 %v599, 64
    %v603 = vpop.permute.xlu0 %602
    %v605 = vmul.f32 %v598, %v603
    %607 = vrot.lane.b32.xlu0 %v605, 32
    %v608 = vpop.permute.xlu0 %607
    %v610 = vadd.f32 %v600, %v608
    %v611 = vtanh.pop %v610
    %613 = vrot.lane.b32.xlu0 %v611, 64
    %v614 = vpop.permute.xlu0 %613
    %v616 = vmul.f32 %v598, %v614
    %617 = vmatprep.subr.mxu0 0.0
    %618 = vmatpush1.msra.mxu0 %v214
    %619 = vmatprep.subr.mxu0 0.0
    %620 = vmatpush1.msra.mxu0 %v215
    %621 = vmatprep.subr.mxu0 0.0
    %622 = vmatpush1.msra.mxu0 %v216
    %623 = vmatprep.subr.mxu0 0.0
    %624 = vmatpush1.msra.mxu0 %v217
    %625 = vmatprep.subr.mxu0 0.0
    %626 = vmatpush1.msra.mxu0 0.0
    %627 = vmatprep.subr.mxu0 0.0
    %628 = vmatpush1.msra.mxu0 0.0
    %629 = vmatprep.subr.mxu0 0.0
    %630 = vmatpush1.msra.mxu0 0.0
    %631 = vmatprep.subr.mxu0 0.0
    %632 = vmatpush1.msra.mxu0 0.0
    %633 = vmatprep.subr.mxu0 0.0
    %634 = vmatpush1.msra.mxu0 0.0
    %635 = vmatprep.subr.mxu0 0.0
    %636 = vmatpush1.msra.mxu0 0.0
    %637 = vmatprep.subr.mxu0 0.0
    %638 = vmatpush1.msra.mxu0 0.0
    %639 = vmatprep.subr.mxu0 0.0
    %640 = vmatpush1.msra.mxu0 0.0
    %641 = vmatprep.subr.mxu0 0.0
    %642 = vmatpush1.msra.mxu0 0.0
    %643 = vmatprep.subr.mxu0 0.0
    %644 = vmatpush1.msra.mxu0 0.0
    %645 = vmatprep.subr.mxu0 0.0
    %646 = vmatpush1.msra.mxu0 0.0
    %647 = vmatprep.subr.mxu0 0.0
    %648 = vmatpush1.msra.mxu0 0.0
    %649 = vmatprep.subr.mxu0 0.0
    %650 = vmatpush1.msra.mxu0 0.0
    %651 = vmatprep.subr.mxu0 0.0
    %652 = vmatpush1.msra.mxu0 0.0
    %653 = vmatprep.subr.mxu0 0.0
    %654 = vmatpush1.msra.mxu0 0.0
    %655 = vmatprep.subr.mxu0 0.0
    %656 = vmatpush1.msra.mxu0 0.0
    %657 = vmatprep.subr.mxu0 0.0
    %658 = vmatpush1.msra.mxu0 0.0
    %659 = vmatprep.subr.mxu0 0.0
    %660 = vmatpush1.msra.mxu0 0.0
    %661 = vmatprep.subr.mxu0 0.0
    %662 = vmatpush1.msra.mxu0 0.0
    %663 = vmatprep.subr.mxu0 0.0
    %664 = vmatpush1.msra.mxu0 0.0
    %665 = vmatprep.subr.mxu0 0.0
    %666 = vmatpush1.msra.mxu0 0.0
    %667 = vmatprep.subr.mxu0 0.0
    %668 = vmatpush1.msra.mxu0 0.0
    %669 = vmatprep.subr.mxu0 0.0
    %670 = vmatpush1.msra.mxu0 0.0
    %671 = vmatprep.subr.mxu0 0.0
    %672 = vmatpush1.msra.mxu0 0.0
    %673 = vmatprep.subr.mxu0 0.0
    %674 = vmatpush1.msra.mxu0 0.0
    %675 = vmatprep.subr.mxu0 0.0
    %676 = vmatpush1.msra.mxu0 0.0
    %677 = vmatprep.subr.mxu0 0.0
    %678 = vmatpush1.msra.mxu0 0.0
    %679 = vmatprep.subr.mxu0 0.0
    %680 = vmatpush1.msra.mxu0 0.0
    %681 = vmatprep.mubr.f32.mxu0 0.0
    %682 = vmatmul.mubr.f32.gmra.mrb[0].mxu0 %v523
    %v683 = vpop.f32.mrb[0].mxu0
    %v684 = vadd.f32 0.0, %v683
    %v685 = vpop.f32.mrb[0].mxu0
    %686 = vdwg.mxu0
    %v687 = vadd.f32 %v186, %v684
    %v688 = vmul.f32 %v687, 0.5
    %v689 = vtanh.pop %v688
    %v690 = vadd.f32 %v689, 1.0
    %v691 = vmul.f32 %v690, 0.5
    %v692 = vtanh.pop %v687
    %v693 = vmul.f32 %v691, %v438
    %695 = vrot.lane.b32.xlu0 %v692, 64
    %v696 = vpop.permute.xlu0 %695
    %v698 = vmul.f32 %v691, %v696
    %700 = vrot.lane.b32.xlu0 %v698, 32
    %v701 = vpop.permute.xlu0 %700
    %v703 = vadd.f32 %v693, %v701
    %v704 = vtanh.pop %v703
    %706 = vrot.lane.b32.xlu0 %v704, 64
    %v707 = vpop.permute.xlu0 %706
    %v709 = vmul.f32 %v691, %v707
    %711 = vrot.lane.b32.xlu0 %v616, 32
    %v712 = vpop.permute.xlu0 %711
    %v713 = vsel %vm84, %v712, 0
    %715 = vmatprep.subr.mxu0 0.0
    %716 = vmatpush1.msra.mxu0 %v222
    %717 = vmatprep.subr.mxu0 0.0
    %718 = vmatpush1.msra.mxu0 %v223
    %719 = vmatprep.subr.mxu0 0.0
    %720 = vmatpush1.msra.mxu0 %v224
    %721 = vmatprep.subr.mxu0 0.0
    %722 = vmatpush1.msra.mxu0 %v225
    %723 = vmatprep.subr.mxu0 0.0
    %724 = vmatpush1.msra.mxu0 0.0
    %725 = vmatprep.subr.mxu0 0.0
    %726 = vmatpush1.msra.mxu0 0.0
    %727 = vmatprep.subr.mxu0 0.0
    %728 = vmatpush1.msra.mxu0 0.0
    %729 = vmatprep.subr.mxu0 0.0
    %730 = vmatpush1.msra.mxu0 0.0
    %731 = vmatprep.subr.mxu0 0.0
    %732 = vmatpush1.msra.mxu0 0.0
    %733 = vmatprep.subr.mxu0 0.0
    %734 = vmatpush1.msra.mxu0 0.0
    %735 = vmatprep.subr.mxu0 0.0
    %736 = vmatpush1.msra.mxu0 0.0
    %737 = vmatprep.subr.mxu0 0.0
    %738 = vmatpush1.msra.mxu0 0.0
    %739 = vmatprep.subr.mxu0 0.0
    %740 = vmatpush1.msra.mxu0 0.0
    %741 = vmatprep.subr.mxu0 0.0
    %742 = vmatpush1.msra.mxu0 0.0
    %743 = vmatprep.subr.mxu0 0.0
    %744 = vmatpush1.msra.mxu0 0.0
    %745 = vmatprep.subr.mxu0 0.0
    %746 = vmatpush1.msra.mxu0 0.0
    %747 = vmatprep.subr.mxu0 0.0
    %748 = vmatpush1.msra.mxu0 0.0
    %749 = vmatprep.subr.mxu0 0.0
    %750 = vmatpush1.msra.mxu0 0.0
    %751 = vmatprep.subr.mxu0 0.0
    %752 = vmatpush1.msra.mxu0 0.0
    %753 = vmatprep.subr.mxu0 0.0
    %754 = vmatpush1.msra.mxu0 0.0
    %755 = vmatprep.subr.mxu0 0.0
    %756 = vmatpush1.msra.mxu0 0.0
    %757 = vmatprep.subr.mxu0 0.0
    %758 = vmatpush1.msra.mxu0 0.0
    %759 = vmatprep.subr.mxu0 0.0
    %760 = vmatpush1.msra.mxu0 0.0
    %761 = vmatprep.subr.mxu0 0.0
    %762 = vmatpush1.msra.mxu0 0.0
    %763 = vmatprep.subr.mxu0 0.0
    %764 = vmatpush1.msra.mxu0 0.0
    %765 = vmatprep.subr.mxu0 0.0
    %766 = vmatpush1.msra.mxu0 0.0
    %767 = vmatprep.subr.mxu0 0.0
    %768 = vmatpush1.msra.mxu0 0.0
    %769 = vmatprep.subr.mxu0 0.0
    %770 = vmatpush1.msra.mxu0 0.0
    %771 = vmatprep.subr.mxu0 0.0
    %772 = vmatpush1.msra.mxu0 0.0
    %773 = vmatprep.subr.mxu0 0.0
    %774 = vmatpush1.msra.mxu0 0.0
    %775 = vmatprep.subr.mxu0 0.0
    %776 = vmatpush1.msra.mxu0 0.0
    %777 = vmatprep.subr.mxu0 0.0
    %778 = vmatpush1.msra.mxu0 0.0
    %779 = vmatprep.mubr.f32.mxu0 0.0
    %780 = vmatmul.mubr.f32.gmra.mrb[0].mxu0 %v713
    %v781 = vpop.f32.mrb[0].mxu0
    %v782 = vadd.f32 %v231, %v781
    %v783 = vpop.f32.mrb[0].mxu0
    %784 = vdwg.mxu0
    %786 = vrot.lane.b32.xlu0 %v709, 32
    %v787 = vpop.permute.xlu0 %786
    %v788 = vsel %vm84, %v787, 0
    %790 = vmatprep.subr.mxu0 0.0
    %791 = vmatpush1.msra.mxu0 %v218
    %792 = vmatprep.subr.mxu0 0.0
    %793 = vmatpush1.msra.mxu0 %v219
    %794 = vmatprep.subr.mxu0 0.0
    %795 = vmatpush1.msra.mxu0 %v220
    %796 = vmatprep.subr.mxu0 0.0
    %797 = vmatpush1.msra.mxu0 %v221
    %798 = vmatprep.subr.mxu0 0.0
    %799 = vmatpush1.msra.mxu0 0.0
    %800 = vmatprep.subr.mxu0 0.0
    %801 = vmatpush1.msra.mxu0 0.0
    %802 = vmatprep.subr.mxu0 0.0
    %803 = vmatpush1.msra.mxu0 0.0
    %804 = vmatprep.subr.mxu0 0.0
    %805 = vmatpush1.msra.mxu0 0.0
    %806 = vmatprep.subr.mxu0 0.0
    %807 = vmatpush1.msra.mxu0 0.0
    %808 = vmatprep.subr.mxu0 0.0
    %809 = vmatpush1.msra.mxu0 0.0
    %810 = vmatprep.subr.mxu0 0.0
    %811 = vmatpush1.msra.mxu0 0.0
    %812 = vmatprep.subr.mxu0 0.0
    %813 = vmatpush1.msra.mxu0 0.0
    %814 = vmatprep.subr.mxu0 0.0
    %815 = vmatpush1.msra.mxu0 0.0
    %816 = vmatprep.subr.mxu0 0.0
    %817 = vmatpush1.msra.mxu0 0.0
    %818 = vmatprep.subr.mxu0 0.0
    %819 = vmatpush1.msra.mxu0 0.0
    %820 = vmatprep.subr.mxu0 0.0
    %821 = vmatpush1.msra.mxu0 0.0
    %822 = vmatprep.subr.mxu0 0.0
    %823 = vmatpush1.msra.mxu0 0.0
    %824 = vmatprep.subr.mxu0 0.0
    %825 = vmatpush1.msra.mxu0 0.0
    %826 = vmatprep.subr.mxu0 0.0
    %827 = vmatpush1.msra.mxu0 0.0
    %828 = vmatprep.subr.mxu0 0.0
    %829 = vmatpush1.msra.mxu0 0.0
    %830 = vmatprep.subr.mxu0 0.0
    %831 = vmatpush1.msra.mxu0 0.0
    %832 = vmatprep.subr.mxu0 0.0
    %833 = vmatpush1.msra.mxu0 0.0
    %834 = vmatprep.subr.mxu0 0.0
    %835 = vmatpush1.msra.mxu0 0.0
    %836 = vmatprep.subr.mxu0 0.0
    %837 = vmatpush1.msra.mxu0 0.0
    %838 = vmatprep.subr.mxu0 0.0
    %839 = vmatpush1.msra.mxu0 0.0
    %840 = vmatprep.subr.mxu0 0.0
    %841 = vmatpush1.msra.mxu0 0.0
    %842 = vmatprep.subr.mxu0 0.0
    %843 = vmatpush1.msra.mxu0 0.0
    %844 = vmatprep.subr.mxu0 0.0
    %845 = vmatpush1.msra.mxu0 0.0
    %846 = vmatprep.subr.mxu0 0.0
    %847 = vmatpush1.msra.mxu0 0.0
    %848 = vmatprep.subr.mxu0 0.0
    %849 = vmatpush1.msra.mxu0 0.0
    %850 = vmatprep.subr.mxu0 0.0
    %851 = vmatpush1.msra.mxu0 0.0
    %852 = vmatprep.subr.mxu0 0.0
    %853 = vmatpush1.msra.mxu0 0.0
    %854 = vmatprep.mubr.f32.mxu0 0.0
    %855 = vmatmul.mubr.f32.gmra.mrb[0].mxu0 %v788
    %v856 = vpop.f32.mrb[0].mxu0
    %v857 = vadd.f32 %v782, %v856
    %v858 = vpop.f32.mrb[0].mxu0
    %859 = vdwg.mxu0
    %v860 = vmul.f32 %v857, 0.5
    %v861 = vtanh.pop %v860
    %v862 = vadd.f32 %v861, 1.0
    %v863 = vmul.f32 %v862, 0.5
    %v864 = vtanh.pop %v857
    %v865 = vmul.f32 %v863, %v610
    %867 = vrot.lane.b32.xlu0 %v864, 64
    %v868 = vpop.permute.xlu0 %867
    %v870 = vmul.f32 %v863, %v868
    %872 = vrot.lane.b32.xlu0 %v870, 32
    %v873 = vpop.permute.xlu0 %872
    %v875 = vadd.f32 %v865, %v873
    %v876 = vtanh.pop %v875
    %878 = vrot.lane.b32.xlu0 %v876, 64
    %v879 = vpop.permute.xlu0 %878
    %v881 = vmul.f32 %v863, %v879
    %882 = vmatprep.subr.mxu0 0.0
    %883 = vmatpush1.msra.mxu0 %v214
    %884 = vmatprep.subr.mxu0 0.0
    %885 = vmatpush1.msra.mxu0 %v215
    %886 = vmatprep.subr.mxu0 0.0
    %887 = vmatpush1.msra.mxu0 %v216
    %888 = vmatprep.subr.mxu0 0.0
    %889 = vmatpush1.msra.mxu0 %v217
    %890 = vmatprep.subr.mxu0 0.0
    %891 = vmatpush1.msra.mxu0 0.0
    %892 = vmatprep.subr.mxu0 0.0
    %893 = vmatpush1.msra.mxu0 0.0
    %894 = vmatprep.subr.mxu0 0.0
    %895 = vmatpush1.msra.mxu0 0.0
    %896 = vmatprep.subr.mxu0 0.0
    %897 = vmatpush1.msra.mxu0 0.0
    %898 = vmatprep.subr.mxu0 0.0
    %899 = vmatpush1.msra.mxu0 0.0
    %900 = vmatprep.subr.mxu0 0.0
    %901 = vmatpush1.msra.mxu0 0.0
    %902 = vmatprep.subr.mxu0 0.0
    %903 = vmatpush1.msra.mxu0 0.0
    %904 = vmatprep.subr.mxu0 0.0
    %905 = vmatpush1.msra.mxu0 0.0
    %906 = vmatprep.subr.mxu0 0.0
    %907 = vmatpush1.msra.mxu0 0.0
    %908 = vmatprep.subr.mxu0 0.0
    %909 = vmatpush1.msra.mxu0 0.0
    %910 = vmatprep.subr.mxu0 0.0
    %911 = vmatpush1.msra.mxu0 0.0
    %912 = vmatprep.subr.mxu0 0.0
    %913 = vmatpush1.msra.mxu0 0.0
    %914 = vmatprep.subr.mxu0 0.0
    %915 = vmatpush1.msra.mxu0 0.0
    %916 = vmatprep.subr.mxu0 0.0
    %917 = vmatpush1.msra.mxu0 0.0
    %918 = vmatprep.subr.mxu0 0.0
    %919 = vmatpush1.msra.mxu0 0.0
    %920 = vmatprep.subr.mxu0 0.0
    %921 = vmatpush1.msra.mxu0 0.0
    %922 = vmatprep.subr.mxu0 0.0
    %923 = vmatpush1.msra.mxu0 0.0
    %924 = vmatprep.subr.mxu0 0.0
    %925 = vmatpush1.msra.mxu0 0.0
    %926 = vmatprep.subr.mxu0 0.0
    %927 = vmatpush1.msra.mxu0 0.0
    %928 = vmatprep.subr.mxu0 0.0
    %929 = vmatpush1.msra.mxu0 0.0
    %930 = vmatprep.subr.mxu0 0.0
    %931 = vmatpush1.msra.mxu0 0.0
    %932 = vmatprep.subr.mxu0 0.0
    %933 = vmatpush1.msra.mxu0 0.0
    %934 = vmatprep.subr.mxu0 0.0
    %935 = vmatpush1.msra.mxu0 0.0
    %936 = vmatprep.subr.mxu0 0.0
    %937 = vmatpush1.msra.mxu0 0.0
    %938 = vmatprep.subr.mxu0 0.0
    %939 = vmatpush1.msra.mxu0 0.0
    %940 = vmatprep.subr.mxu0 0.0
    %941 = vmatpush1.msra.mxu0 0.0
    %942 = vmatprep.subr.mxu0 0.0
    %943 = vmatpush1.msra.mxu0 0.0
    %944 = vmatprep.subr.mxu0 0.0
    %945 = vmatpush1.msra.mxu0 0.0
    %946 = vmatprep.mubr.f32.mxu0 0.0
    %947 = vmatmul.mubr.f32.gmra.mrb[0].mxu0 %v788
    %v948 = vpop.f32.mrb[0].mxu0
    %v949 = vadd.f32 0.0, %v948
    %v950 = vpop.f32.mrb[0].mxu0
    %951 = vdwg.mxu0
    %v952 = vadd.f32 %v191, %v949
    %v953 = vmul.f32 %v952, 0.5
    %v954 = vtanh.pop %v953
    %v955 = vadd.f32 %v954, 1.0
    %v956 = vmul.f32 %v955, 0.5
    %v957 = vtanh.pop %v952
    %v958 = vmul.f32 %v956, %v703
    %960 = vrot.lane.b32.xlu0 %v957, 64
    %v961 = vpop.permute.xlu0 %960
    %v963 = vmul.f32 %v956, %v961
    %965 = vrot.lane.b32.xlu0 %v963, 32
    %v966 = vpop.permute.xlu0 %965
    %v968 = vadd.f32 %v958, %v966
    %v969 = vtanh.pop %v968
    %971 = vrot.lane.b32.xlu0 %v969, 64
    %v972 = vpop.permute.xlu0 %971
    %v974 = vmul.f32 %v956, %v972
    %976 = vrot.lane.b32.xlu0 %v881, 32
    %v977 = vpop.permute.xlu0 %976
    %v978 = vsel %vm84, %v977, 0
    %980 = vmatprep.subr.mxu0 0.0
    %981 = vmatpush1.msra.mxu0 %v222
    %982 = vmatprep.subr.mxu0 0.0
    %983 = vmatpush1.msra.mxu0 %v223
    %984 = vmatprep.subr.mxu0 0.0
    %985 = vmatpush1.msra.mxu0 %v224
    %986 = vmatprep.subr.mxu0 0.0
    %987 = vmatpush1.msra.mxu0 %v225
    %988 = vmatprep.subr.mxu0 0.0
    %989 = vmatpush1.msra.mxu0 0.0
    %990 = vmatprep.subr.mxu0 0.0
    %991 = vmatpush1.msra.mxu0 0.0
    %992 = vmatprep.subr.mxu0 0.0
    %993 = vmatpush1.msra.mxu0 0.0
    %994 = vmatprep.subr.mxu0 0.0
    %995 = vmatpush1.msra.mxu0 0.0
    %996 = vmatprep.subr.mxu0 0.0
    %997 = vmatpush1.msra.mxu0 0.0
    %998 = vmatprep.subr.mxu0 0.0
    %999 = vmatpush1.msra.mxu0 0.0
    %1000 = vmatprep.subr.mxu0 0.0
    %1001 = vmatpush1.msra.mxu0 0.0
    %1002 = vmatprep.subr.mxu0 0.0
    %1003 = vmatpush1.msra.mxu0 0.0
    %1004 = vmatprep.subr.mxu0 0.0
    %1005 = vmatpush1.msra.mxu0 0.0
    %1006 = vmatprep.subr.mxu0 0.0
    %1007 = vmatpush1.msra.mxu0 0.0
    %1008 = vmatprep.subr.mxu0 0.0
    %1009 = vmatpush1.msra.mxu0 0.0
    %1010 = vmatprep.subr.mxu0 0.0
    %1011 = vmatpush1.msra.mxu0 0.0
    %1012 = vmatprep.subr.mxu0 0.0
    %1013 = vmatpush1.msra.mxu0 0.0
    %1014 = vmatprep.subr.mxu0 0.0
    %1015 = vmatpush1.msra.mxu0 0.0
    %1016 = vmatprep.subr.mxu0 0.0
    %1017 = vmatpush1.msra.mxu0 0.0
    %1018 = vmatprep.subr.mxu0 0.0
    %1019 = vmatpush1.msra.mxu0 0.0
    %1020 = vmatprep.subr.mxu0 0.0
    %1021 = vmatpush1.msra.mxu0 0.0
    %1022 = vmatprep.subr.mxu0 0.0
    %1023 = vmatpush1.msra.mxu0 0.0
    %1024 = vmatprep.subr.mxu0 0.0
    %1025 = vmatpush1.msra.mxu0 0.0
    %1026 = vmatprep.subr.mxu0 0.0
    %1027 = vmatpush1.msra.mxu0 0.0
    %1028 = vmatprep.subr.mxu0 0.0
    %1029 = vmatpush1.msra.mxu0 0.0
    %1030 = vmatprep.subr.mxu0 0.0
    %1031 = vmatpush1.msra.mxu0 0.0
    %1032 = vmatprep.subr.mxu0 0.0
    %1033 = vmatpush1.msra.mxu0 0.0
    %1034 = vmatprep.subr.mxu0 0.0
    %1035 = vmatpush1.msra.mxu0 0.0
    %1036 = vmatprep.subr.mxu0 0.0
    %1037 = vmatpush1.msra.mxu0 0.0
    %1038 = vmatprep.subr.mxu0 0.0
    %1039 = vmatpush1.msra.mxu0 0.0
    %1040 = vmatprep.subr.mxu0 0.0
    %1041 = vmatpush1.msra.mxu0 0.0
    %1042 = vmatprep.subr.mxu0 0.0
    %1043 = vmatpush1.msra.mxu0 0.0
    %1044 = vmatprep.mubr.f32.mxu0 0.0
    %1045 = vmatmul.mubr.f32.gmra.mrb[0].mxu0 %v978
    %v1046 = vpop.f32.mrb[0].mxu0
    %v1047 = vadd.f32 %v231, %v1046
    %v1048 = vpop.f32.mrb[0].mxu0
    %1049 = vdwg.mxu0
    %1051 = vrot.lane.b32.xlu0 %v974, 32
    %v1052 = vpop.permute.xlu0 %1051
    %v1053 = vsel %vm84, %v1052, 0
    %1055 = vmatprep.subr.mxu0 0.0
    %1056 = vmatpush1.msra.mxu0 %v218
    %1057 = vmatprep.subr.mxu0 0.0
    %1058 = vmatpush1.msra.mxu0 %v219
    %1059 = vmatprep.subr.mxu0 0.0
    %1060 = vmatpush1.msra.mxu0 %v220
    %1061 = vmatprep.subr.mxu0 0.0
    %1062 = vmatpush1.msra.mxu0 %v221
    %1063 = vmatprep.subr.mxu0 0.0
    %1064 = vmatpush1.msra.mxu0 0.0
    %1065 = vmatprep.subr.mxu0 0.0
    %1066 = vmatpush1.msra.mxu0 0.0
    %1067 = vmatprep.subr.mxu0 0.0
    %1068 = vmatpush1.msra.mxu0 0.0
    %1069 = vmatprep.subr.mxu0 0.0
    %1070 = vmatpush1.msra.mxu0 0.0
    %1071 = vmatprep.subr.mxu0 0.0
    %1072 = vmatpush1.msra.mxu0 0.0
    %1073 = vmatprep.subr.mxu0 0.0
    %1074 = vmatpush1.msra.mxu0 0.0
    %1075 = vmatprep.subr.mxu0 0.0
    %1076 = vmatpush1.msra.mxu0 0.0
    %1077 = vmatprep.subr.mxu0 0.0
    %1078 = vmatpush1.msra.mxu0 0.0
    %1079 = vmatprep.subr.mxu0 0.0
    %1080 = vmatpush1.msra.mxu0 0.0
    %1081 = vmatprep.subr.mxu0 0.0
    %1082 = vmatpush1.msra.mxu0 0.0
    %1083 = vmatprep.subr.mxu0 0.0
    %1084 = vmatpush1.msra.mxu0 0.0
    %1085 = vmatprep.subr.mxu0 0.0
    %1086 = vmatpush1.msra.mxu0 0.0
    %1087 = vmatprep.subr.mxu0 0.0
    %1088 = vmatpush1.msra.mxu0 0.0
    %1089 = vmatprep.subr.mxu0 0.0
    %1090 = vmatpush1.msra.mxu0 0.0
    %1091 = vmatprep.subr.mxu0 0.0
    %1092 = vmatpush1.msra.mxu0 0.0
    %1093 = vmatprep.subr.mxu0 0.0
    %1094 = vmatpush1.msra.mxu0 0.0
    %1095 = vmatprep.subr.mxu0 0.0
    %1096 = vmatpush1.msra.mxu0 0.0
    %1097 = vmatprep.subr.mxu0 0.0
    %1098 = vmatpush1.msra.mxu0 0.0
    %1099 = vmatprep.subr.mxu0 0.0
    %1100 = vmatpush1.msra.mxu0 0.0
    %1101 = vmatprep.subr.mxu0 0.0
    %1102 = vmatpush1.msra.mxu0 0.0
    %1103 = vmatprep.subr.mxu0 0.0
    %1104 = vmatpush1.msra.mxu0 0.0
    %1105 = vmatprep.subr.mxu0 0.0
    %1106 = vmatpush1.msra.mxu0 0.0
    %1107 = vmatprep.subr.mxu0 0.0
    %1108 = vmatpush1.msra.mxu0 0.0
    %1109 = vmatprep.subr.mxu0 0.0
    %1110 = vmatpush1.msra.mxu0 0.0
    %1111 = vmatprep.subr.mxu0 0.0
    %1112 = vmatpush1.msra.mxu0 0.0
    %1113 = vmatprep.subr.mxu0 0.0
    %1114 = vmatpush1.msra.mxu0 0.0
    %1115 = vmatprep.subr.mxu0 0.0
    %1116 = vmatpush1.msra.mxu0 0.0
    %1117 = vmatprep.subr.mxu0 0.0
    %1118 = vmatpush1.msra.mxu0 0.0
    %1119 = vmatprep.mubr.f32.mxu0 0.0
    %1120 = vmatmul.mubr.f32.gmra.mrb[0].mxu0 %v1053
    %v1121 = vpop.f32.mrb[0].mxu0
    %v1122 = vadd.f32 %v1047, %v1121
    %v1123 = vpop.f32.mrb[0].mxu0
    %1124 = vdwg.mxu0
    %v1125 = vmul.f32 %v1122, 0.5
    %v1126 = vtanh.pop %v1125
    %v1127 = vadd.f32 %v1126, 1.0
    %v1128 = vmul.f32 %v1127, 0.5
    %v1129 = vtanh.pop %v1122
    %v1130 = vmul.f32 %v1128, %v875
    %1132 = vrot.lane.b32.xlu0 %v1129, 64
    %v1133 = vpop.permute.xlu0 %1132
    %v1135 = vmul.f32 %v1128, %v1133
    %1137 = vrot.lane.b32.xlu0 %v1135, 32
    %v1138 = vpop.permute.xlu0 %1137
    %v1140 = vadd.f32 %v1130, %v1138
    %v1141 = vtanh.pop %v1140
    %1143 = vrot.lane.b32.xlu0 %v1141, 64
    %v1144 = vpop.permute.xlu0 %1143
    %v1146 = vmul.f32 %v1128, %v1144
    %1147 = vmatprep.subr.mxu0 0.0
    %1148 = vmatpush1.msra.mxu0 %v214
    %1149 = vmatprep.subr.mxu0 0.0
    %1150 = vmatpush1.msra.mxu0 %v215
    %1151 = vmatprep.subr.mxu0 0.0
    %1152 = vmatpush1.msra.mxu0 %v216
    %1153 = vmatprep.subr.mxu0 0.0
    %1154 = vmatpush1.msra.mxu0 %v217
    %1155 = vmatprep.subr.mxu0 0.0
    %1156 = vmatpush1.msra.mxu0 0.0
    %1157 = vmatprep.subr.mxu0 0.0
    %1158 = vmatpush1.msra.mxu0 0.0
    %1159 = vmatprep.subr.mxu0 0.0
    %1160 = vmatpush1.msra.mxu0 0.0
    %1161 = vmatprep.subr.mxu0 0.0
    %1162 = vmatpush1.msra.mxu0 0.0
    %1163 = vmatprep.subr.mxu0 0.0
    %1164 = vmatpush1.msra.mxu0 0.0
    %1165 = vmatprep.subr.mxu0 0.0
    %1166 = vmatpush1.msra.mxu0 0.0
    %1167 = vmatprep.subr.mxu0 0.0
    %1168 = vmatpush1.msra.mxu0 0.0
    %1169 = vmatprep.subr.mxu0 0.0
    %1170 = vmatpush1.msra.mxu0 0.0
    %1171 = vmatprep.subr.mxu0 0.0
    %1172 = vmatpush1.msra.mxu0 0.0
    %1173 = vmatprep.subr.mxu0 0.0
    %1174 = vmatpush1.msra.mxu0 0.0
    %1175 = vmatprep.subr.mxu0 0.0
    %1176 = vmatpush1.msra.mxu0 0.0
    %1177 = vmatprep.subr.mxu0 0.0
    %1178 = vmatpush1.msra.mxu0 0.0
    %1179 = vmatprep.subr.mxu0 0.0
    %1180 = vmatpush1.msra.mxu0 0.0
    %1181 = vmatprep.subr.mxu0 0.0
    %1182 = vmatpush1.msra.mxu0 0.0
    %1183 = vmatprep.subr.mxu0 0.0
    %1184 = vmatpush1.msra.mxu0 0.0
    %1185 = vmatprep.subr.mxu0 0.0
    %1186 = vmatpush1.msra.mxu0 0.0
    %1187 = vmatprep.subr.mxu0 0.0
    %1188 = vmatpush1.msra.mxu0 0.0
    %1189 = vmatprep.subr.mxu0 0.0
    %1190 = vmatpush1.msra.mxu0 0.0
    %1191 = vmatprep.subr.mxu0 0.0
    %1192 = vmatpush1.msra.mxu0 0.0
    %1193 = vmatprep.subr.mxu0 0.0
    %1194 = vmatpush1.msra.mxu0 0.0
    %1195 = vmatprep.subr.mxu0 0.0
    %1196 = vmatpush1.msra.mxu0 0.0
    %1197 = vmatprep.subr.mxu0 0.0
    %1198 = vmatpush1.msra.mxu0 0.0
    %1199 = vmatprep.subr.mxu0 0.0
    %1200 = vmatpush1.msra.mxu0 0.0
    %1201 = vmatprep.subr.mxu0 0.0
    %1202 = vmatpush1.msra.mxu0 0.0
    %1203 = vmatprep.subr.mxu0 0.0
    %1204 = vmatpush1.msra.mxu0 0.0
    %1205 = vmatprep.subr.mxu0 0.0
    %1206 = vmatpush1.msra.mxu0 0.0
    %1207 = vmatprep.subr.mxu0 0.0
    %1208 = vmatpush1.msra.mxu0 0.0
    %1209 = vmatprep.subr.mxu0 0.0
    %1210 = vmatpush1.msra.mxu0 0.0
    %1211 = vmatprep.mubr.f32.mxu0 0.0
    %1212 = vmatmul.mubr.f32.gmra.mrb[0].mxu0 %v1053
    %v1213 = vpop.f32.mrb[0].mxu0
    %v1214 = vadd.f32 0.0, %v1213
    %v1215 = vpop.f32.mrb[0].mxu0
    %1216 = vdwg.mxu0
    %v1217 = vadd.f32 %v196, %v1214
    %v1218 = vmul.f32 %v1217, 0.5
    %v1219 = vtanh.pop %v1218
    %v1220 = vadd.f32 %v1219, 1.0
    %v1221 = vmul.f32 %v1220, 0.5
    %v1222 = vtanh.pop %v1217
    %v1223 = vmul.f32 %v1221, %v968
    %1225 = vrot.lane.b32.xlu0 %v1222, 64
    %v1226 = vpop.permute.xlu0 %1225
    %v1228 = vmul.f32 %v1221, %v1226
    %1230 = vrot.lane.b32.xlu0 %v1228, 32
    %v1231 = vpop.permute.xlu0 %1230
    %v1233 = vadd.f32 %v1223, %v1231
    %v1234 = vtanh.pop %v1233
    %1236 = vrot.lane.b32.xlu0 %v1234, 64
    %v1237 = vpop.permute.xlu0 %1236
    %v1239 = vmul.f32 %v1221, %v1237
    %1241 = vrot.lane.b32.xlu0 %v1146, 32
    %v1242 = vpop.permute.xlu0 %1241
    %v1243 = vsel %vm84, %v1242, 0
    %1245 = vmatprep.subr.mxu0 0.0
    %1246 = vmatpush1.msra.mxu0 %v222
    %1247 = vmatprep.subr.mxu0 0.0
    %1248 = vmatpush1.msra.mxu0 %v223
    %1249 = vmatprep.subr.mxu0 0.0
    %1250 = vmatpush1.msra.mxu0 %v224
    %1251 = vmatprep.subr.mxu0 0.0
    %1252 = vmatpush1.msra.mxu0 %v225
    %1253 = vmatprep.subr.mxu0 0.0
    %1254 = vmatpush1.msra.mxu0 0.0
    %1255 = vmatprep.subr.mxu0 0.0
    %1256 = vmatpush1.msra.mxu0 0.0
    %1257 = vmatprep.subr.mxu0 0.0
    %1258 = vmatpush1.msra.mxu0 0.0
    %1259 = vmatprep.subr.mxu0 0.0
    %1260 = vmatpush1.msra.mxu0 0.0
    %1261 = vmatprep.subr.mxu0 0.0
    %1262 = vmatpush1.msra.mxu0 0.0
    %1263 = vmatprep.subr.mxu0 0.0
    %1264 = vmatpush1.msra.mxu0 0.0
    %1265 = vmatprep.subr.mxu0 0.0
    %1266 = vmatpush1.msra.mxu0 0.0
    %1267 = vmatprep.subr.mxu0 0.0
    %1268 = vmatpush1.msra.mxu0 0.0
    %1269 = vmatprep.subr.mxu0 0.0
    %1270 = vmatpush1.msra.mxu0 0.0
    %1271 = vmatprep.subr.mxu0 0.0
    %1272 = vmatpush1.msra.mxu0 0.0
    %1273 = vmatprep.subr.mxu0 0.0
    %1274 = vmatpush1.msra.mxu0 0.0
    %1275 = vmatprep.subr.mxu0 0.0
    %1276 = vmatpush1.msra.mxu0 0.0
    %1277 = vmatprep.subr.mxu0 0.0
    %1278 = vmatpush1.msra.mxu0 0.0
    %1279 = vmatprep.subr.mxu0 0.0
    %1280 = vmatpush1.msra.mxu0 0.0
    %1281 = vmatprep.subr.mxu0 0.0
    %1282 = vmatpush1.msra.mxu0 0.0
    %1283 = vmatprep.subr.mxu0 0.0
    %1284 = vmatpush1.msra.mxu0 0.0
    %1285 = vmatprep.subr.mxu0 0.0
    %1286 = vmatpush1.msra.mxu0 0.0
    %1287 = vmatprep.subr.mxu0 0.0
    %1288 = vmatpush1.msra.mxu0 0.0
    %1289 = vmatprep.subr.mxu0 0.0
    %1290 = vmatpush1.msra.mxu0 0.0
    %1291 = vmatprep.subr.mxu0 0.0
    %1292 = vmatpush1.msra.mxu0 0.0
    %1293 = vmatprep.subr.mxu0 0.0
    %1294 = vmatpush1.msra.mxu0 0.0
    %1295 = vmatprep.subr.mxu0 0.0
    %1296 = vmatpush1.msra.mxu0 0.0
    %1297 = vmatprep.subr.mxu0 0.0
    %1298 = vmatpush1.msra.mxu0 0.0
    %1299 = vmatprep.subr.mxu0 0.0
    %1300 = vmatpush1.msra.mxu0 0.0
    %1301 = vmatprep.subr.mxu0 0.0
    %1302 = vmatpush1.msra.mxu0 0.0
    %1303 = vmatprep.subr.mxu0 0.0
    %1304 = vmatpush1.msra.mxu0 0.0
    %1305 = vmatprep.subr.mxu0 0.0
    %1306 = vmatpush1.msra.mxu0 0.0
    %1307 = vmatprep.subr.mxu0 0.0
    %1308 = vmatpush1.msra.mxu0 0.0
    %1309 = vmatprep.mubr.f32.mxu0 0.0
    %1310 = vmatmul.mubr.f32.gmra.mrb[0].mxu0 %v1243
    %v1311 = vpop.f32.mrb[0].mxu0
    %v1312 = vadd.f32 %v231, %v1311
    %v1313 = vpop.f32.mrb[0].mxu0
    %1314 = vdwg.mxu0
    %1316 = vrot.lane.b32.xlu0 %v1239, 32
    %v1317 = vpop.permute.xlu0 %1316
    %v1318 = vsel %vm84, %v1317, 0
    %1320 = vmatprep.subr.mxu0 0.0
    %1321 = vmatpush1.msra.mxu0 %v218
    %1322 = vmatprep.subr.mxu0 0.0
    %1323 = vmatpush1.msra.mxu0 %v219
    %1324 = vmatprep.subr.mxu0 0.0
    %1325 = vmatpush1.msra.mxu0 %v220
    %1326 = vmatprep.subr.mxu0 0.0
    %1327 = vmatpush1.msra.mxu0 %v221
    %1328 = vmatprep.subr.mxu0 0.0
    %1329 = vmatpush1.msra.mxu0 0.0
    %1330 = vmatprep.subr.mxu0 0.0
    %1331 = vmatpush1.msra.mxu0 0.0
    %1332 = vmatprep.subr.mxu0 0.0
    %1333 = vmatpush1.msra.mxu0 0.0
    %1334 = vmatprep.subr.mxu0 0.0
    %1335 = vmatpush1.msra.mxu0 0.0
    %1336 = vmatprep.subr.mxu0 0.0
    %1337 = vmatpush1.msra.mxu0 0.0
    %1338 = vmatprep.subr.mxu0 0.0
    %1339 = vmatpush1.msra.mxu0 0.0
    %1340 = vmatprep.subr.mxu0 0.0
    %1341 = vmatpush1.msra.mxu0 0.0
    %1342 = vmatprep.subr.mxu0 0.0
    %1343 = vmatpush1.msra.mxu0 0.0
    %1344 = vmatprep.subr.mxu0 0.0
    %1345 = vmatpush1.msra.mxu0 0.0
    %1346 = vmatprep.subr.mxu0 0.0
    %1347 = vmatpush1.msra.mxu0 0.0
    %1348 = vmatprep.subr.mxu0 0.0
    %1349 = vmatpush1.msra.mxu0 0.0
    %1350 = vmatprep.subr.mxu0 0.0
    %1351 = vmatpush1.msra.mxu0 0.0
    %1352 = vmatprep.subr.mxu0 0.0
    %1353 = vmatpush1.msra.mxu0 0.0
    %1354 = vmatprep.subr.mxu0 0.0
    %1355 = vmatpush1.msra.mxu0 0.0
    %1356 = vmatprep.subr.mxu0 0.0
    %1357 = vmatpush1.msra.mxu0 0.0
    %1358 = vmatprep.subr.mxu0 0.0
    %1359 = vmatpush1.msra.mxu0 0.0
    %1360 = vmatprep.subr.mxu0 0.0
    %1361 = vmatpush1.msra.mxu0 0.0
    %1362 = vmatprep.subr.mxu0 0.0
    %1363 = vmatpush1.msra.mxu0 0.0
    %1364 = vmatprep.subr.mxu0 0.0
    %1365 = vmatpush1.msra.mxu0 0.0
    %1366 = vmatprep.subr.mxu0 0.0
    %1367 = vmatpush1.msra.mxu0 0.0
    %1368 = vmatprep.subr.mxu0 0.0
    %1369 = vmatpush1.msra.mxu0 0.0
    %1370 = vmatprep.subr.mxu0 0.0
    %1371 = vmatpush1.msra.mxu0 0.0
    %1372 = vmatprep.subr.mxu0 0.0
    %1373 = vmatpush1.msra.mxu0 0.0
    %1374 = vmatprep.subr.mxu0 0.0
    %1375 = vmatpush1.msra.mxu0 0.0
    %1376 = vmatprep.subr.mxu0 0.0
    %1377 = vmatpush1.msra.mxu0 0.0
    %1378 = vmatprep.subr.mxu0 0.0
    %1379 = vmatpush1.msra.mxu0 0.0
    %1380 = vmatprep.subr.mxu0 0.0
    %1381 = vmatpush1.msra.mxu0 0.0
    %1382 = vmatprep.subr.mxu0 0.0
    %1383 = vmatpush1.msra.mxu0 0.0
    %1384 = vmatprep.mubr.f32.mxu0 0.0
    %1385 = vmatmul.mubr.f32.gmra.mrb[0].mxu0 %v1318
    %v1386 = vpop.f32.mrb[0].mxu0
    %v1387 = vadd.f32 %v1312, %v1386
    %v1388 = vpop.f32.mrb[0].mxu0
    %1389 = vdwg.mxu0
    %v1390 = vmul.f32 %v1387, 0.5
    %v1391 = vtanh.pop %v1390
    %v1392 = vadd.f32 %v1391, 1.0
    %v1393 = vmul.f32 %v1392, 0.5
    %v1394 = vtanh.pop %v1387
    %v1395 = vmul.f32 %v1393, %v1140
    %1397 = vrot.lane.b32.xlu0 %v1394, 64
    %v1398 = vpop.permute.xlu0 %1397
    %v1400 = vmul.f32 %v1393, %v1398
    %1402 = vrot.lane.b32.xlu0 %v1400, 32
    %v1403 = vpop.permute.xlu0 %1402
    %v1405 = vadd.f32 %v1395, %v1403
    %v1406 = vtanh.pop %v1405
    %1408 = vrot.lane.b32.xlu0 %v1406, 64
    %v1409 = vpop.permute.xlu0 %1408
    %v1411 = vmul.f32 %v1393, %v1409
    %1412 = vmatprep.subr.mxu0 0.0
    %1413 = vmatpush1.msra.mxu0 %v214
    %1414 = vmatprep.subr.mxu0 0.0
    %1415 = vmatpush1.msra.mxu0 %v215
    %1416 = vmatprep.subr.mxu0 0.0
    %1417 = vmatpush1.msra.mxu0 %v216
    %1418 = vmatprep.subr.mxu0 0.0
    %1419 = vmatpush1.msra.mxu0 %v217
    %1420 = vmatprep.subr.mxu0 0.0
    %1421 = vmatpush1.msra.mxu0 0.0
    %1422 = vmatprep.subr.mxu0 0.0
    %1423 = vmatpush1.msra.mxu0 0.0
    %1424 = vmatprep.subr.mxu0 0.0
    %1425 = vmatpush1.msra.mxu0 0.0
    %1426 = vmatprep.subr.mxu0 0.0
    %1427 = vmatpush1.msra.mxu0 0.0
    %1428 = vmatprep.subr.mxu0 0.0
    %1429 = vmatpush1.msra.mxu0 0.0
    %1430 = vmatprep.subr.mxu0 0.0
    %1431 = vmatpush1.msra.mxu0 0.0
    %1432 = vmatprep.subr.mxu0 0.0
    %1433 = vmatpush1.msra.mxu0 0.0
    %1434 = vmatprep.subr.mxu0 0.0
    %1435 = vmatpush1.msra.mxu0 0.0
    %1436 = vmatprep.subr.mxu0 0.0
    %1437 = vmatpush1.msra.mxu0 0.0
    %1438 = vmatprep.subr.mxu0 0.0
    %1439 = vmatpush1.msra.mxu0 0.0
    %1440 = vmatprep.subr.mxu0 0.0
    %1441 = vmatpush1.msra.mxu0 0.0
    %1442 = vmatprep.subr.mxu0 0.0
    %1443 = vmatpush1.msra.mxu0 0.0
    %1444 = vmatprep.subr.mxu0 0.0
    %1445 = vmatpush1.msra.mxu0 0.0
    %1446 = vmatprep.subr.mxu0 0.0
    %1447 = vmatpush1.msra.mxu0 0.0
    %1448 = vmatprep.subr.mxu0 0.0
    %1449 = vmatpush1.msra.mxu0 0.0
    %1450 = vmatprep.subr.mxu0 0.0
    %1451 = vmatpush1.msra.mxu0 0.0
    %1452 = vmatprep.subr.mxu0 0.0
    %1453 = vmatpush1.msra.mxu0 0.0
    %1454 = vmatprep.subr.mxu0 0.0
    %1455 = vmatpush1.msra.mxu0 0.0
    %1456 = vmatprep.subr.mxu0 0.0
    %1457 = vmatpush1.msra.mxu0 0.0
    %1458 = vmatprep.subr.mxu0 0.0
    %1459 = vmatpush1.msra.mxu0 0.0
    %1460 = vmatprep.subr.mxu0 0.0
    %1461 = vmatpush1.msra.mxu0 0.0
    %1462 = vmatprep.subr.mxu0 0.0
    %1463 = vmatpush1.msra.mxu0 0.0
    %1464 = vmatprep.subr.mxu0 0.0
    %1465 = vmatpush1.msra.mxu0 0.0
    %1466 = vmatprep.subr.mxu0 0.0
    %1467 = vmatpush1.msra.mxu0 0.0
    %1468 = vmatprep.subr.mxu0 0.0
    %1469 = vmatpush1.msra.mxu0 0.0
    %1470 = vmatprep.subr.mxu0 0.0
    %1471 = vmatpush1.msra.mxu0 0.0
    %1472 = vmatprep.subr.mxu0 0.0
    %1473 = vmatpush1.msra.mxu0 0.0
    %1474 = vmatprep.subr.mxu0 0.0
    %1475 = vmatpush1.msra.mxu0 0.0
    %1476 = vmatprep.mubr.f32.mxu0 0.0
    %1477 = vmatmul.mubr.f32.gmra.mrb[0].mxu0 %v1318
    %v1478 = vpop.f32.mrb[0].mxu0
    %v1479 = vadd.f32 0.0, %v1478
    %v1480 = vpop.f32.mrb[0].mxu0
    %1481 = vdwg.mxu0
    %v1482 = vadd.f32 %v201, %v1479
    %v1483 = vmul.f32 %v1482, 0.5
    %v1484 = vtanh.pop %v1483
    %v1485 = vadd.f32 %v1484, 1.0
    %v1486 = vmul.f32 %v1485, 0.5
    %v1487 = vtanh.pop %v1482
    %v1488 = vmul.f32 %v1486, %v1233
    %1490 = vrot.lane.b32.xlu0 %v1487, 64
    %v1491 = vpop.permute.xlu0 %1490
    %v1493 = vmul.f32 %v1486, %v1491
    %1495 = vrot.lane.b32.xlu0 %v1493, 32
    %v1496 = vpop.permute.xlu0 %1495
    %v1498 = vadd.f32 %v1488, %v1496
    %v1499 = vtanh.pop %v1498
    %1501 = vrot.lane.b32.xlu0 %v1499, 64
    %v1502 = vpop.permute.xlu0 %1501
    %v1504 = vmul.f32 %v1486, %v1502
    %1506 = vrot.lane.b32.xlu0 %v1411, 32
    %v1507 = vpop.permute.xlu0 %1506
    %v1508 = vsel %vm84, %v1507, 0
    %1510 = vmatprep.subr.mxu0 0.0
    %1511 = vmatpush1.msra.mxu0 %v222
    %1512 = vmatprep.subr.mxu0 0.0
    %1513 = vmatpush1.msra.mxu0 %v223
    %1514 = vmatprep.subr.mxu0 0.0
    %1515 = vmatpush1.msra.mxu0 %v224
    %1516 = vmatprep.subr.mxu0 0.0
    %1517 = vmatpush1.msra.mxu0 %v225
    %1518 = vmatprep.subr.mxu0 0.0
    %1519 = vmatpush1.msra.mxu0 0.0
    %1520 = vmatprep.subr.mxu0 0.0
    %1521 = vmatpush1.msra.mxu0 0.0
    %1522 = vmatprep.subr.mxu0 0.0
    %1523 = vmatpush1.msra.mxu0 0.0
    %1524 = vmatprep.subr.mxu0 0.0
    %1525 = vmatpush1.msra.mxu0 0.0
    %1526 = vmatprep.subr.mxu0 0.0
    %1527 = vmatpush1.msra.mxu0 0.0
    %1528 = vmatprep.subr.mxu0 0.0
    %1529 = vmatpush1.msra.mxu0 0.0
    %1530 = vmatprep.subr.mxu0 0.0
    %1531 = vmatpush1.msra.mxu0 0.0
    %1532 = vmatprep.subr.mxu0 0.0
    %1533 = vmatpush1.msra.mxu0 0.0
    %1534 = vmatprep.subr.mxu0 0.0
    %1535 = vmatpush1.msra.mxu0 0.0
    %1536 = vmatprep.subr.mxu0 0.0
    %1537 = vmatpush1.msra.mxu0 0.0
    %1538 = vmatprep.subr.mxu0 0.0
    %1539 = vmatpush1.msra.mxu0 0.0
    %1540 = vmatprep.subr.mxu0 0.0
    %1541 = vmatpush1.msra.mxu0 0.0
    %1542 = vmatprep.subr.mxu0 0.0
    %1543 = vmatpush1.msra.mxu0 0.0
    %1544 = vmatprep.subr.mxu0 0.0
    %1545 = vmatpush1.msra.mxu0 0.0
    %1546 = vmatprep.subr.mxu0 0.0
    %1547 = vmatpush1.msra.mxu0 0.0
    %1548 = vmatprep.subr.mxu0 0.0
    %1549 = vmatpush1.msra.mxu0 0.0
    %1550 = vmatprep.subr.mxu0 0.0
    %1551 = vmatpush1.msra.mxu0 0.0
    %1552 = vmatprep.subr.mxu0 0.0
    %1553 = vmatpush1.msra.mxu0 0.0
    %1554 = vmatprep.subr.mxu0 0.0
    %1555 = vmatpush1.msra.mxu0 0.0
    %1556 = vmatprep.subr.mxu0 0.0
    %1557 = vmatpush1.msra.mxu0 0.0
    %1558 = vmatprep.subr.mxu0 0.0
    %1559 = vmatpush1.msra.mxu0 0.0
    %1560 = vmatprep.subr.mxu0 0.0
    %1561 = vmatpush1.msra.mxu0 0.0
    %1562 = vmatprep.subr.mxu0 0.0
    %1563 = vmatpush1.msra.mxu0 0.0
    %1564 = vmatprep.subr.mxu0 0.0
    %1565 = vmatpush1.msra.mxu0 0.0
    %1566 = vmatprep.subr.mxu0 0.0
    %1567 = vmatpush1.msra.mxu0 0.0
    %1568 = vmatprep.subr.mxu0 0.0
    %1569 = vmatpush1.msra.mxu0 0.0
    %1570 = vmatprep.subr.mxu0 0.0
    %1571 = vmatpush1.msra.mxu0 0.0
    %1572 = vmatprep.subr.mxu0 0.0
    %1573 = vmatpush1.msra.mxu0 0.0
    %1574 = vmatprep.mubr.f32.mxu0 0.0
    %1575 = vmatmul.mubr.f32.gmra.mrb[0].mxu0 %v1508
    %v1576 = vpop.f32.mrb[0].mxu0
    %v1577 = vadd.f32 %v231, %v1576
    %v1578 = vpop.f32.mrb[0].mxu0
    %1579 = vdwg.mxu0
    %1581 = vrot.lane.b32.xlu0 %v1504, 32
    %v1582 = vpop.permute.xlu0 %1581
    %v1583 = vsel %vm84, %v1582, 0
    %1585 = vmatprep.subr.mxu0 0.0
    %1586 = vmatpush1.msra.mxu0 %v218
    %1587 = vmatprep.subr.mxu0 0.0
    %1588 = vmatpush1.msra.mxu0 %v219
    %1589 = vmatprep.subr.mxu0 0.0
    %1590 = vmatpush1.msra.mxu0 %v220
    %1591 = vmatprep.subr.mxu0 0.0
    %1592 = vmatpush1.msra.mxu0 %v221
    %1593 = vmatprep.subr.mxu0 0.0
    %1594 = vmatpush1.msra.mxu0 0.0
    %1595 = vmatprep.subr.mxu0 0.0
    %1596 = vmatpush1.msra.mxu0 0.0
    %1597 = vmatprep.subr.mxu0 0.0
    %1598 = vmatpush1.msra.mxu0 0.0
    %1599 = vmatprep.subr.mxu0 0.0
    %1600 = vmatpush1.msra.mxu0 0.0
    %1601 = vmatprep.subr.mxu0 0.0
    %1602 = vmatpush1.msra.mxu0 0.0
    %1603 = vmatprep.subr.mxu0 0.0
    %1604 = vmatpush1.msra.mxu0 0.0
    %1605 = vmatprep.subr.mxu0 0.0
    %1606 = vmatpush1.msra.mxu0 0.0
    %1607 = vmatprep.subr.mxu0 0.0
    %1608 = vmatpush1.msra.mxu0 0.0
    %1609 = vmatprep.subr.mxu0 0.0
    %1610 = vmatpush1.msra.mxu0 0.0
    %1611 = vmatprep.subr.mxu0 0.0
    %1612 = vmatpush1.msra.mxu0 0.0
    %1613 = vmatprep.subr.mxu0 0.0
    %1614 = vmatpush1.msra.mxu0 0.0
    %1615 = vmatprep.subr.mxu0 0.0
    %1616 = vmatpush1.msra.mxu0 0.0
    %1617 = vmatprep.subr.mxu0 0.0
    %1618 = vmatpush1.msra.mxu0 0.0
    %1619 = vmatprep.subr.mxu0 0.0
    %1620 = vmatpush1.msra.mxu0 0.0
    %1621 = vmatprep.subr.mxu0 0.0
    %1622 = vmatpush1.msra.mxu0 0.0
    %1623 = vmatprep.subr.mxu0 0.0
    %1624 = vmatpush1.msra.mxu0 0.0
    %1625 = vmatprep.subr.mxu0 0.0
    %1626 = vmatpush1.msra.mxu0 0.0
    %1627 = vmatprep.subr.mxu0 0.0
    %1628 = vmatpush1.msra.mxu0 0.0
    %1629 = vmatprep.subr.mxu0 0.0
    %1630 = vmatpush1.msra.mxu0 0.0
    %1631 = vmatprep.subr.mxu0 0.0
    %1632 = vmatpush1.msra.mxu0 0.0
    %1633 = vmatprep.subr.mxu0 0.0
    %1634 = vmatpush1.msra.mxu0 0.0
    %1635 = vmatprep.subr.mxu0 0.0
    %1636 = vmatpush1.msra.mxu0 0.0
    %1637 = vmatprep.subr.mxu0 0.0
    %1638 = vmatpush1.msra.mxu0 0.0
    %1639 = vmatprep.subr.mxu0 0.0
    %1640 = vmatpush1.msra.mxu0 0.0
    %1641 = vmatprep.subr.mxu0 0.0
    %1642 = vmatpush1.msra.mxu0 0.0
    %1643 = vmatprep.subr.mxu0 0.0
    %1644 = vmatpush1.msra.mxu0 0.0
    %1645 = vmatprep.subr.mxu0 0.0
    %1646 = vmatpush1.msra.mxu0 0.0
    %1647 = vmatprep.subr.mxu0 0.0
    %1648 = vmatpush1.msra.mxu0 0.0
    %1649 = vmatprep.mubr.f32.mxu0 0.0
    %1650 = vmatmul.mubr.f32.gmra.mrb[0].mxu0 %v1583
    %v1651 = vpop.f32.mrb[0].mxu0
    %v1652 = vadd.f32 %v1577, %v1651
    %v1653 = vpop.f32.mrb[0].mxu0
    %1654 = vdwg.mxu0
    %v1655 = vmul.f32 %v1652, 0.5
    %v1656 = vtanh.pop %v1655
    %v1657 = vadd.f32 %v1656, 1.0
    %v1658 = vmul.f32 %v1657, 0.5
    %v1659 = vtanh.pop %v1652
    %v1660 = vmul.f32 %v1658, %v1405
    %1662 = vrot.lane.b32.xlu0 %v1659, 64
    %v1663 = vpop.permute.xlu0 %1662
    %v1665 = vmul.f32 %v1658, %v1663
    %1667 = vrot.lane.b32.xlu0 %v1665, 32
    %v1668 = vpop.permute.xlu0 %1667
    %v1670 = vadd.f32 %v1660, %v1668
    %v1671 = vtanh.pop %v1670
    %1673 = vrot.lane.b32.xlu0 %v1671, 64
    %v1674 = vpop.permute.xlu0 %1673
    %v1676 = vmul.f32 %v1658, %v1674
    %1677 = vmatprep.subr.mxu0 0.0
    %1678 = vmatpush1.msra.mxu0 %v214
    %1679 = vmatprep.subr.mxu0 0.0
    %1680 = vmatpush1.msra.mxu0 %v215
    %1681 = vmatprep.subr.mxu0 0.0
    %1682 = vmatpush1.msra.mxu0 %v216
    %1683 = vmatprep.subr.mxu0 0.0
    %1684 = vmatpush1.msra.mxu0 %v217
    %1685 = vmatprep.subr.mxu0 0.0
    %1686 = vmatpush1.msra.mxu0 0.0
    %1687 = vmatprep.subr.mxu0 0.0
    %1688 = vmatpush1.msra.mxu0 0.0
    %1689 = vmatprep.subr.mxu0 0.0
    %1690 = vmatpush1.msra.mxu0 0.0
    %1691 = vmatprep.subr.mxu0 0.0
    %1692 = vmatpush1.msra.mxu0 0.0
    %1693 = vmatprep.subr.mxu0 0.0
    %1694 = vmatpush1.msra.mxu0 0.0
    %1695 = vmatprep.subr.mxu0 0.0
    %1696 = vmatpush1.msra.mxu0 0.0
    %1697 = vmatprep.subr.mxu0 0.0
    %1698 = vmatpush1.msra.mxu0 0.0
    %1699 = vmatprep.subr.mxu0 0.0
    %1700 = vmatpush1.msra.mxu0 0.0
    %1701 = vmatprep.subr.mxu0 0.0
    %1702 = vmatpush1.msra.mxu0 0.0
    %1703 = vmatprep.subr.mxu0 0.0
    %1704 = vmatpush1.msra.mxu0 0.0
    %1705 = vmatprep.subr.mxu0 0.0
    %1706 = vmatpush1.msra.mxu0 0.0
    %1707 = vmatprep.subr.mxu0 0.0
    %1708 = vmatpush1.msra.mxu0 0.0
    %1709 = vmatprep.subr.mxu0 0.0
    %1710 = vmatpush1.msra.mxu0 0.0
    %1711 = vmatprep.subr.mxu0 0.0
    %1712 = vmatpush1.msra.mxu0 0.0
    %1713 = vmatprep.subr.mxu0 0.0
    %1714 = vmatpush1.msra.mxu0 0.0
    %1715 = vmatprep.subr.mxu0 0.0
    %1716 = vmatpush1.msra.mxu0 0.0
    %1717 = vmatprep.subr.mxu0 0.0
    %1718 = vmatpush1.msra.mxu0 0.0
    %1719 = vmatprep.subr.mxu0 0.0
    %1720 = vmatpush1.msra.mxu0 0.0
    %1721 = vmatprep.subr.mxu0 0.0
    %1722 = vmatpush1.msra.mxu0 0.0
    %1723 = vmatprep.subr.mxu0 0.0
    %1724 = vmatpush1.msra.mxu0 0.0
    %1725 = vmatprep.subr.mxu0 0.0
    %1726 = vmatpush1.msra.mxu0 0.0
    %1727 = vmatprep.subr.mxu0 0.0
    %1728 = vmatpush1.msra.mxu0 0.0
    %1729 = vmatprep.subr.mxu0 0.0
    %1730 = vmatpush1.msra.mxu0 0.0
    %1731 = vmatprep.subr.mxu0 0.0
    %1732 = vmatpush1.msra.mxu0 0.0
    %1733 = vmatprep.subr.mxu0 0.0
    %1734 = vmatpush1.msra.mxu0 0.0
    %1735 = vmatprep.subr.mxu0 0.0
    %1736 = vmatpush1.msra.mxu0 0.0
    %1737 = vmatprep.subr.mxu0 0.0
    %1738 = vmatpush1.msra.mxu0 0.0
    %1739 = vmatprep.subr.mxu0 0.0
    %1740 = vmatpush1.msra.mxu0 0.0
    %1741 = vmatprep.mubr.f32.mxu0 0.0
    %1742 = vmatmul.mubr.f32.gmra.mrb[0].mxu0 %v1583
    %v1743 = vpop.f32.mrb[0].mxu0
    %v1744 = vadd.f32 0.0, %v1743
    %v1745 = vpop.f32.mrb[0].mxu0
    %1746 = vdwg.mxu0
    %v1747 = vadd.f32 %v206, %v1744
    %v1748 = vmul.f32 %v1747, 0.5
    %v1749 = vtanh.pop %v1748
    %v1750 = vadd.f32 %v1749, 1.0
    %v1751 = vmul.f32 %v1750, 0.5
    %v1752 = vtanh.pop %v1747
    %v1753 = vmul.f32 %v1751, %v1498
    %1755 = vrot.lane.b32.xlu0 %v1752, 64
    %v1756 = vpop.permute.xlu0 %1755
    %v1758 = vmul.f32 %v1751, %v1756
    %1760 = vrot.lane.b32.xlu0 %v1758, 32
    %v1761 = vpop.permute.xlu0 %1760
    %v1763 = vadd.f32 %v1753, %v1761
    %v1764 = vtanh.pop %v1763
    %1766 = vrot.lane.b32.xlu0 %v1764, 64
    %v1767 = vpop.permute.xlu0 %1766
    %v1769 = vmul.f32 %v1751, %v1767
    %1771 = vrot.lane.b32.xlu0 %v1676, 32
    %v1772 = vpop.permute.xlu0 %1771
    %v1773 = vsel %vm84, %v1772, 0
    %1775 = vmatprep.subr.mxu0 0.0
    %1776 = vmatpush1.msra.mxu0 %v222
    %1777 = vmatprep.subr.mxu0 0.0
    %1778 = vmatpush1.msra.mxu0 %v223
    %1779 = vmatprep.subr.mxu0 0.0
    %1780 = vmatpush1.msra.mxu0 %v224
    %1781 = vmatprep.subr.mxu0 0.0
    %1782 = vmatpush1.msra.mxu0 %v225
    %1783 = vmatprep.subr.mxu0 0.0
    %1784 = vmatpush1.msra.mxu0 0.0
    %1785 = vmatprep.subr.mxu0 0.0
    %1786 = vmatpush1.msra.mxu0 0.0
    %1787 = vmatprep.subr.mxu0 0.0
    %1788 = vmatpush1.msra.mxu0 0.0
    %1789 = vmatprep.subr.mxu0 0.0
    %1790 = vmatpush1.msra.mxu0 0.0
    %1791 = vmatprep.subr.mxu0 0.0
    %1792 = vmatpush1.msra.mxu0 0.0
    %1793 = vmatprep.subr.mxu0 0.0
    %1794 = vmatpush1.msra.mxu0 0.0
    %1795 = vmatprep.subr.mxu0 0.0
    %1796 = vmatpush1.msra.mxu0 0.0
    %1797 = vmatprep.subr.mxu0 0.0
    %1798 = vmatpush1.msra.mxu0 0.0
    %1799 = vmatprep.subr.mxu0 0.0
    %1800 = vmatpush1.msra.mxu0 0.0
    %1801 = vmatprep.subr.mxu0 0.0
    %1802 = vmatpush1.msra.mxu0 0.0
    %1803 = vmatprep.subr.mxu0 0.0
    %1804 = vmatpush1.msra.mxu0 0.0
    %1805 = vmatprep.subr.mxu0 0.0
    %1806 = vmatpush1.msra.mxu0 0.0
    %1807 = vmatprep.subr.mxu0 0.0
    %1808 = vmatpush1.msra.mxu0 0.0
    %1809 = vmatprep.subr.mxu0 0.0
    %1810 = vmatpush1.msra.mxu0 0.0
    %1811 = vmatprep.subr.mxu0 0.0
    %1812 = vmatpush1.msra.mxu0 0.0
    %1813 = vmatprep.subr.mxu0 0.0
    %1814 = vmatpush1.msra.mxu0 0.0
    %1815 = vmatprep.subr.mxu0 0.0
    %1816 = vmatpush1.msra.mxu0 0.0
    %1817 = vmatprep.subr.mxu0 0.0
    %1818 = vmatpush1.msra.mxu0 0.0
    %1819 = vmatprep.subr.mxu0 0.0
    %1820 = vmatpush1.msra.mxu0 0.0
    %1821 = vmatprep.subr.mxu0 0.0
    %1822 = vmatpush1.msra.mxu0 0.0
    %1823 = vmatprep.subr.mxu0 0.0
    %1824 = vmatpush1.msra.mxu0 0.0
    %1825 = vmatprep.subr.mxu0 0.0
    %1826 = vmatpush1.msra.mxu0 0.0
    %1827 = vmatprep.subr.mxu0 0.0
    %1828 = vmatpush1.msra.mxu0 0.0
    %1829 = vmatprep.subr.mxu0 0.0
    %1830 = vmatpush1.msra.mxu0 0.0
    %1831 = vmatprep.subr.mxu0 0.0
    %1832 = vmatpush1.msra.mxu0 0.0
    %1833 = vmatprep.subr.mxu0 0.0
    %1834 = vmatpush1.msra.mxu0 0.0
    %1835 = vmatprep.subr.mxu0 0.0
    %1836 = vmatpush1.msra.mxu0 0.0
    %1837 = vmatprep.subr.mxu0 0.0
    %1838 = vmatpush1.msra.mxu0 0.0
    %1839 = vmatprep.mubr.f32.mxu0 0.0
    %1840 = vmatmul.mubr.f32.gmra.mrb[0].mxu0 %v1773
    %v1841 = vpop.f32.mrb[0].mxu0
    %v1842 = vadd.f32 %v231, %v1841
    %v1843 = vpop.f32.mrb[0].mxu0
    %1844 = vdwg.mxu0
    %1846 = vrot.lane.b32.xlu0 %v1769, 32
    %v1847 = vpop.permute.xlu0 %1846
    %v1848 = vsel %vm84, %v1847, 0
    %1850 = vmatprep.subr.mxu0 0.0
    %1851 = vmatpush1.msra.mxu0 %v218
    %1852 = vmatprep.subr.mxu0 0.0
    %1853 = vmatpush1.msra.mxu0 %v219
    %1854 = vmatprep.subr.mxu0 0.0
    %1855 = vmatpush1.msra.mxu0 %v220
    %1856 = vmatprep.subr.mxu0 0.0
    %1857 = vmatpush1.msra.mxu0 %v221
    %1858 = vmatprep.subr.mxu0 0.0
    %1859 = vmatpush1.msra.mxu0 0.0
    %1860 = vmatprep.subr.mxu0 0.0
    %1861 = vmatpush1.msra.mxu0 0.0
    %1862 = vmatprep.subr.mxu0 0.0
    %1863 = vmatpush1.msra.mxu0 0.0
    %1864 = vmatprep.subr.mxu0 0.0
    %1865 = vmatpush1.msra.mxu0 0.0
    %1866 = vmatprep.subr.mxu0 0.0
    %1867 = vmatpush1.msra.mxu0 0.0
    %1868 = vmatprep.subr.mxu0 0.0
    %1869 = vmatpush1.msra.mxu0 0.0
    %1870 = vmatprep.subr.mxu0 0.0
    %1871 = vmatpush1.msra.mxu0 0.0
    %1872 = vmatprep.subr.mxu0 0.0
    %1873 = vmatpush1.msra.mxu0 0.0
    %1874 = vmatprep.subr.mxu0 0.0
    %1875 = vmatpush1.msra.mxu0 0.0
    %1876 = vmatprep.subr.mxu0 0.0
    %1877 = vmatpush1.msra.mxu0 0.0
    %1878 = vmatprep.subr.mxu0 0.0
    %1879 = vmatpush1.msra.mxu0 0.0
    %1880 = vmatprep.subr.mxu0 0.0
    %1881 = vmatpush1.msra.mxu0 0.0
    %1882 = vmatprep.subr.mxu0 0.0
    %1883 = vmatpush1.msra.mxu0 0.0
    %1884 = vmatprep.subr.mxu0 0.0
    %1885 = vmatpush1.msra.mxu0 0.0
    %1886 = vmatprep.subr.mxu0 0.0
    %1887 = vmatpush1.msra.mxu0 0.0
    %1888 = vmatprep.subr.mxu0 0.0
    %1889 = vmatpush1.msra.mxu0 0.0
    %1890 = vmatprep.subr.mxu0 0.0
    %1891 = vmatpush1.msra.mxu0 0.0
    %1892 = vmatprep.subr.mxu0 0.0
    %1893 = vmatpush1.msra.mxu0 0.0
    %1894 = vmatprep.subr.mxu0 0.0
    %1895 = vmatpush1.msra.mxu0 0.0
    %1896 = vmatprep.subr.mxu0 0.0
    %1897 = vmatpush1.msra.mxu0 0.0
    %1898 = vmatprep.subr.mxu0 0.0
    %1899 = vmatpush1.msra.mxu0 0.0
    %1900 = vmatprep.subr.mxu0 0.0
    %1901 = vmatpush1.msra.mxu0 0.0
    %1902 = vmatprep.subr.mxu0 0.0
    %1903 = vmatpush1.msra.mxu0 0.0
    %1904 = vmatprep.subr.mxu0 0.0
    %1905 = vmatpush1.msra.mxu0 0.0
    %1906 = vmatprep.subr.mxu0 0.0
    %1907 = vmatpush1.msra.mxu0 0.0
    %1908 = vmatprep.subr.mxu0 0.0
    %1909 = vmatpush1.msra.mxu0 0.0
    %1910 = vmatprep.subr.mxu0 0.0
    %1911 = vmatpush1.msra.mxu0 0.0
    %1912 = vmatprep.subr.mxu0 0.0
    %1913 = vmatpush1.msra.mxu0 0.0
    %1914 = vmatprep.mubr.f32.mxu0 0.0
    %1915 = vmatmul.mubr.f32.gmra.mrb[0].mxu0 %v1848
    %v1916 = vpop.f32.mrb[0].mxu0
    %v1917 = vadd.f32 %v1842, %v1916
    %v1918 = vpop.f32.mrb[0].mxu0
    %1919 = vdwg.mxu0
    %v1920 = vmul.f32 %v1917, 0.5
    %v1921 = vtanh.pop %v1920
    %v1922 = vadd.f32 %v1921, 1.0
    %v1923 = vmul.f32 %v1922, 0.5
    %v1924 = vtanh.pop %v1917
    %v1925 = vmul.f32 %v1923, %v1670
    %1927 = vrot.lane.b32.xlu0 %v1924, 64
    %v1928 = vpop.permute.xlu0 %1927
    %v1930 = vmul.f32 %v1923, %v1928
    %1932 = vrot.lane.b32.xlu0 %v1930, 32
    %v1933 = vpop.permute.xlu0 %1932
    %v1935 = vadd.f32 %v1925, %v1933
    %v1936 = vtanh.pop %v1935
    %1938 = vrot.lane.b32.xlu0 %v1936, 64
    %v1939 = vpop.permute.xlu0 %1938
    %v1941 = vmul.f32 %v1923, %v1939
    %1942 = vmatprep.subr.mxu0 0.0
    %1943 = vmatpush1.msra.mxu0 %v214
    %1944 = vmatprep.subr.mxu0 0.0
    %1945 = vmatpush1.msra.mxu0 %v215
    %1946 = vmatprep.subr.mxu0 0.0
    %1947 = vmatpush1.msra.mxu0 %v216
    %1948 = vmatprep.subr.mxu0 0.0
    %1949 = vmatpush1.msra.mxu0 %v217
    %1950 = vmatprep.subr.mxu0 0.0
    %1951 = vmatpush1.msra.mxu0 0.0
    %1952 = vmatprep.subr.mxu0 0.0
    %1953 = vmatpush1.msra.mxu0 0.0
    %1954 = vmatprep.subr.mxu0 0.0
    %1955 = vmatpush1.msra.mxu0 0.0
    %1956 = vmatprep.subr.mxu0 0.0
    %1957 = vmatpush1.msra.mxu0 0.0
    %1958 = vmatprep.subr.mxu0 0.0
    %1959 = vmatpush1.msra.mxu0 0.0
    %1960 = vmatprep.subr.mxu0 0.0
    %1961 = vmatpush1.msra.mxu0 0.0
    %1962 = vmatprep.subr.mxu0 0.0
    %1963 = vmatpush1.msra.mxu0 0.0
    %1964 = vmatprep.subr.mxu0 0.0
    %1965 = vmatpush1.msra.mxu0 0.0
    %1966 = vmatprep.subr.mxu0 0.0
    %1967 = vmatpush1.msra.mxu0 0.0
    %1968 = vmatprep.subr.mxu0 0.0
    %1969 = vmatpush1.msra.mxu0 0.0
    %1970 = vmatprep.subr.mxu0 0.0
    %1971 = vmatpush1.msra.mxu0 0.0
    %1972 = vmatprep.subr.mxu0 0.0
    %1973 = vmatpush1.msra.mxu0 0.0
    %1974 = vmatprep.subr.mxu0 0.0
    %1975 = vmatpush1.msra.mxu0 0.0
    %1976 = vmatprep.subr.mxu0 0.0
    %1977 = vmatpush1.msra.mxu0 0.0
    %1978 = vmatprep.subr.mxu0 0.0
    %1979 = vmatpush1.msra.mxu0 0.0
    %1980 = vmatprep.subr.mxu0 0.0
    %1981 = vmatpush1.msra.mxu0 0.0
    %1982 = vmatprep.subr.mxu0 0.0
    %1983 = vmatpush1.msra.mxu0 0.0
    %1984 = vmatprep.subr.mxu0 0.0
    %1985 = vmatpush1.msra.mxu0 0.0
    %1986 = vmatprep.subr.mxu0 0.0
    %1987 = vmatpush1.msra.mxu0 0.0
    %1988 = vmatprep.subr.mxu0 0.0
    %1989 = vmatpush1.msra.mxu0 0.0
    %1990 = vmatprep.subr.mxu0 0.0
    %1991 = vmatpush1.msra.mxu0 0.0
    %1992 = vmatprep.subr.mxu0 0.0
    %1993 = vmatpush1.msra.mxu0 0.0
    %1994 = vmatprep.subr.mxu0 0.0
    %1995 = vmatpush1.msra.mxu0 0.0
    %1996 = vmatprep.subr.mxu0 0.0
    %1997 = vmatpush1.msra.mxu0 0.0
    %1998 = vmatprep.subr.mxu0 0.0
    %1999 = vmatpush1.msra.mxu0 0.0
    %2000 = vmatprep.subr.mxu0 0.0
    %2001 = vmatpush1.msra.mxu0 0.0
    %2002 = vmatprep.subr.mxu0 0.0
    %2003 = vmatpush1.msra.mxu0 0.0
    %2004 = vmatprep.subr.mxu0 0.0
    %2005 = vmatpush1.msra.mxu0 0.0
    %2006 = vmatprep.mubr.f32.mxu0 0.0
    %2007 = vmatmul.mubr.f32.gmra.mrb[0].mxu0 %v1848
    %v2008 = vpop.f32.mrb[0].mxu0
    %v2009 = vadd.f32 0.0, %v2008
    %v2010 = vpop.f32.mrb[0].mxu0
    %2011 = vdwg.mxu0
    %v2012 = vadd.f32 %v211, %v2009
    %v2013 = vmul.f32 %v2012, 0.5
    %v2014 = vtanh.pop %v2013
    %v2015 = vadd.f32 %v2014, 1.0
    %v2016 = vmul.f32 %v2015, 0.5
    %v2017 = vtanh.pop %v2012
    %v2018 = vmul.f32 %v2016, %v1763
    %2020 = vrot.lane.b32.xlu0 %v2017, 64
    %v2021 = vpop.permute.xlu0 %2020
    %v2023 = vmul.f32 %v2016, %v2021
    %2025 = vrot.lane.b32.xlu0 %v2023, 32
    %v2026 = vpop.permute.xlu0 %2025
    %v2028 = vadd.f32 %v2018, %v2026
    %v2029 = vtanh.pop %v2028
    %2031 = vrot.lane.b32.xlu0 %v2029, 64
    %v2032 = vpop.permute.xlu0 %2031
    %v2034 = vmul.f32 %v2016, %v2032
    %2036 = vrot.lane.b32.xlu0 %v1941, 32
    %v2037 = vpop.permute.xlu0 %2036
    %v2038 = vsel %vm84, %v2037, 0
    %2040 = vmatprep.subr.mxu0 0.0
    %2041 = vmatpush1.msra.mxu0 %v222
    %2042 = vmatprep.subr.mxu0 0.0
    %2043 = vmatpush1.msra.mxu0 %v223
    %2044 = vmatprep.subr.mxu0 0.0
    %2045 = vmatpush1.msra.mxu0 %v224
    %2046 = vmatprep.subr.mxu0 0.0
    %2047 = vmatpush1.msra.mxu0 %v225
    %2048 = vmatprep.subr.mxu0 0.0
    %2049 = vmatpush1.msra.mxu0 0.0
    %2050 = vmatprep.subr.mxu0 0.0
    %2051 = vmatpush1.msra.mxu0 0.0
    %2052 = vmatprep.subr.mxu0 0.0
    %2053 = vmatpush1.msra.mxu0 0.0
    %2054 = vmatprep.subr.mxu0 0.0
    %2055 = vmatpush1.msra.mxu0 0.0
    %2056 = vmatprep.subr.mxu0 0.0
    %2057 = vmatpush1.msra.mxu0 0.0
    %2058 = vmatprep.subr.mxu0 0.0
    %2059 = vmatpush1.msra.mxu0 0.0
    %2060 = vmatprep.subr.mxu0 0.0
    %2061 = vmatpush1.msra.mxu0 0.0
    %2062 = vmatprep.subr.mxu0 0.0
    %2063 = vmatpush1.msra.mxu0 0.0
    %2064 = vmatprep.subr.mxu0 0.0
    %2065 = vmatpush1.msra.mxu0 0.0
    %2066 = vmatprep.subr.mxu0 0.0
    %2067 = vmatpush1.msra.mxu0 0.0
    %2068 = vmatprep.subr.mxu0 0.0
    %2069 = vmatpush1.msra.mxu0 0.0
    %2070 = vmatprep.subr.mxu0 0.0
    %2071 = vmatpush1.msra.mxu0 0.0
    %2072 = vmatprep.subr.mxu0 0.0
    %2073 = vmatpush1.msra.mxu0 0.0
    %2074 = vmatprep.subr.mxu0 0.0
    %2075 = vmatpush1.msra.mxu0 0.0
    %2076 = vmatprep.subr.mxu0 0.0
    %2077 = vmatpush1.msra.mxu0 0.0
    %2078 = vmatprep.subr.mxu0 0.0
    %2079 = vmatpush1.msra.mxu0 0.0
    %2080 = vmatprep.subr.mxu0 0.0
    %2081 = vmatpush1.msra.mxu0 0.0
    %2082 = vmatprep.subr.mxu0 0.0
    %2083 = vmatpush1.msra.mxu0 0.0
    %2084 = vmatprep.subr.mxu0 0.0
    %2085 = vmatpush1.msra.mxu0 0.0
    %2086 = vmatprep.subr.mxu0 0.0
    %2087 = vmatpush1.msra.mxu0 0.0
    %2088 = vmatprep.subr.mxu0 0.0
    %2089 = vmatpush1.msra.mxu0 0.0
    %2090 = vmatprep.subr.mxu0 0.0
    %2091 = vmatpush1.msra.mxu0 0.0
    %2092 = vmatprep.subr.mxu0 0.0
    %2093 = vmatpush1.msra.mxu0 0.0
    %2094 = vmatprep.subr.mxu0 0.0
    %2095 = vmatpush1.msra.mxu0 0.0
    %2096 = vmatprep.subr.mxu0 0.0
    %2097 = vmatpush1.msra.mxu0 0.0
    %2098 = vmatprep.subr.mxu0 0.0
    %2099 = vmatpush1.msra.mxu0 0.0
    %2100 = vmatprep.subr.mxu0 0.0
    %2101 = vmatpush1.msra.mxu0 0.0
    %2102 = vmatprep.subr.mxu0 0.0
    %2103 = vmatpush1.msra.mxu0 0.0
    %2104 = vmatprep.mubr.f32.mxu0 0.0
    %2105 = vmatmul.mubr.f32.gmra.mrb[0].mxu0 %v2038
    %v2106 = vpop.f32.mrb[0].mxu0
    %v2107 = vadd.f32 %v231, %v2106
    %v2108 = vpop.f32.mrb[0].mxu0
    %2109 = vdwg.mxu0
    %2111 = vrot.lane.b32.xlu0 %v2034, 32
    %v2112 = vpop.permute.xlu0 %2111
    %v2113 = vsel %vm84, %v2112, 0
    %2115 = vmatprep.subr.mxu0 0.0
    %2116 = vmatpush1.msra.mxu0 %v218
    %2117 = vmatprep.subr.mxu0 0.0
    %2118 = vmatpush1.msra.mxu0 %v219
    %2119 = vmatprep.subr.mxu0 0.0
    %2120 = vmatpush1.msra.mxu0 %v220
    %2121 = vmatprep.subr.mxu0 0.0
    %2122 = vmatpush1.msra.mxu0 %v221
    %2123 = vmatprep.subr.mxu0 0.0
    %2124 = vmatpush1.msra.mxu0 0.0
    %2125 = vmatprep.subr.mxu0 0.0
    %2126 = vmatpush1.msra.mxu0 0.0
    %2127 = vmatprep.subr.mxu0 0.0
    %2128 = vmatpush1.msra.mxu0 0.0
    %2129 = vmatprep.subr.mxu0 0.0
    %2130 = vmatpush1.msra.mxu0 0.0
    %2131 = vmatprep.subr.mxu0 0.0
    %2132 = vmatpush1.msra.mxu0 0.0
    %2133 = vmatprep.subr.mxu0 0.0
    %2134 = vmatpush1.msra.mxu0 0.0
    %2135 = vmatprep.subr.mxu0 0.0
    %2136 = vmatpush1.msra.mxu0 0.0
    %2137 = vmatprep.subr.mxu0 0.0
    %2138 = vmatpush1.msra.mxu0 0.0
    %2139 = vmatprep.subr.mxu0 0.0
    %2140 = vmatpush1.msra.mxu0 0.0
    %2141 = vmatprep.subr.mxu0 0.0
    %2142 = vmatpush1.msra.mxu0 0.0
    %2143 = vmatprep.subr.mxu0 0.0
    %2144 = vmatpush1.msra.mxu0 0.0
    %2145 = vmatprep.subr.mxu0 0.0
    %2146 = vmatpush1.msra.mxu0 0.0
    %2147 = vmatprep.subr.mxu0 0.0
    %2148 = vmatpush1.msra.mxu0 0.0
    %2149 = vmatprep.subr.mxu0 0.0
    %2150 = vmatpush1.msra.mxu0 0.0
    %2151 = vmatprep.subr.mxu0 0.0
    %2152 = vmatpush1.msra.mxu0 0.0
    %2153 = vmatprep.subr.mxu0 0.0
    %2154 = vmatpush1.msra.mxu0 0.0
    %2155 = vmatprep.subr.mxu0 0.0
    %2156 = vmatpush1.msra.mxu0 0.0
    %2157 = vmatprep.subr.mxu0 0.0
    %2158 = vmatpush1.msra.mxu0 0.0
    %2159 = vmatprep.subr.mxu0 0.0
    %2160 = vmatpush1.msra.mxu0 0.0
    %2161 = vmatprep.subr.mxu0 0.0
    %2162 = vmatpush1.msra.mxu0 0.0
    %2163 = vmatprep.subr.mxu0 0.0
    %2164 = vmatpush1.msra.mxu0 0.0
    %2165 = vmatprep.subr.mxu0 0.0
    %2166 = vmatpush1.msra.mxu0 0.0
    %2167 = vmatprep.subr.mxu0 0.0
    %2168 = vmatpush1.msra.mxu0 0.0
    %2169 = vmatprep.subr.mxu0 0.0
    %2170 = vmatpush1.msra.mxu0 0.0
    %2171 = vmatprep.subr.mxu0 0.0
    %2172 = vmatpush1.msra.mxu0 0.0
    %2173 = vmatprep.subr.mxu0 0.0
    %2174 = vmatpush1.msra.mxu0 0.0
    %2175 = vmatprep.subr.mxu0 0.0
    %2176 = vmatpush1.msra.mxu0 0.0
    %2177 = vmatprep.subr.mxu0 0.0
    %2178 = vmatpush1.msra.mxu0 0.0
    %2179 = vmatprep.mubr.f32.mxu0 0.0
    %2180 = vmatmul.mubr.f32.gmra.mrb[0].mxu0 %v2113
    %v2181 = vpop.f32.mrb[0].mxu0
    %v2182 = vadd.f32 %v2107, %v2181
    %v2183 = vpop.f32.mrb[0].mxu0
    %2184 = vdwg.mxu0
    %v2185 = vmul.f32 %v2182, 0.5
    %v2186 = vtanh.pop %v2185
    %v2187 = vadd.f32 %v2186, 1.0
    %v2188 = vmul.f32 %v2187, 0.5
    %v2189 = vtanh.pop %v2182
    %v2190 = vmul.f32 %v2188, %v1935
    %2192 = vrot.lane.b32.xlu0 %v2189, 64
    %v2193 = vpop.permute.xlu0 %2192
    %v2195 = vmul.f32 %v2188, %v2193
    %2197 = vrot.lane.b32.xlu0 %v2195, 32
    %v2198 = vpop.permute.xlu0 %2197
    %v2200 = vadd.f32 %v2190, %v2198
    %v2201 = vtanh.pop %v2200
    %2203 = vrot.lane.b32.xlu0 %v2201, 64
    %v2204 = vpop.permute.xlu0 %2203
    %v2206 = vmul.f32 %v2188, %v2204
    %v2207 = vld [vmem:[#allocation5] sm:$0xff]
    %v2208 = vld [vmem:[#allocation5 + $0x8] sm:$0xff]
    %v2209 = vld [vmem:[#allocation5 + $0x10] sm:$0xff]
    %v2210 = vld [vmem:[#allocation5 + $0x18] sm:$0xff]
    %v2211 = vld [vmem:[%s8] sm:$0x1]
    %v2213 = vlaneseq
    %v2214 = vshrl.u32 %v2213, 7
    %v2215 = vsub.s32 0, %v2214
    %v2216 = vrot.slane %v2211, %v2215
    %2219 = vrot.lane.b32.xlu0 %v2206, 32
    %v2220 = vpop.permute.xlu0 %2219
    %v2221 = vsel %vm84, %v2220, 0
    %2223 = vmatprep.subr.mxu0 0.0
    %2224 = vmatpush1.msra.mxu0 %v2207
    %2225 = vmatprep.subr.mxu0 0.0
    %2226 = vmatpush1.msra.mxu0 %v2208
    %2227 = vmatprep.subr.mxu0 0.0
    %2228 = vmatpush1.msra.mxu0 %v2209
    %2229 = vmatprep.subr.mxu0 0.0
    %2230 = vmatpush1.msra.mxu0 %v2210
    %2231 = vmatprep.subr.mxu0 0.0
    %2232 = vmatpush1.msra.mxu0 0.0
    %2233 = vmatprep.subr.mxu0 0.0
    %2234 = vmatpush1.msra.mxu0 0.0
    %2235 = vmatprep.subr.mxu0 0.0
    %2236 = vmatpush1.msra.mxu0 0.0
    %2237 = vmatprep.subr.mxu0 0.0
    %2238 = vmatpush1.msra.mxu0 0.0
    %2239 = vmatprep.subr.mxu0 0.0
    %2240 = vmatpush1.msra.mxu0 0.0
    %2241 = vmatprep.subr.mxu0 0.0
    %2242 = vmatpush1.msra.mxu0 0.0
    %2243 = vmatprep.subr.mxu0 0.0
    %2244 = vmatpush1.msra.mxu0 0.0
    %2245 = vmatprep.subr.mxu0 0.0
    %2246 = vmatpush1.msra.mxu0 0.0
    %2247 = vmatprep.subr.mxu0 0.0
    %2248 = vmatpush1.msra.mxu0 0.0
    %2249 = vmatprep.subr.mxu0 0.0
    %2250 = vmatpush1.msra.mxu0 0.0
    %2251 = vmatprep.subr.mxu0 0.0
    %2252 = vmatpush1.msra.mxu0 0.0
    %2253 = vmatprep.subr.mxu0 0.0
    %2254 = vmatpush1.msra.mxu0 0.0
    %2255 = vmatprep.subr.mxu0 0.0
    %2256 = vmatpush1.msra.mxu0 0.0
    %2257 = vmatprep.subr.mxu0 0.0
    %2258 = vmatpush1.msra.mxu0 0.0
    %2259 = vmatprep.subr.mxu0 0.0
    %2260 = vmatpush1.msra.mxu0 0.0
    %2261 = vmatprep.subr.mxu0 0.0
    %2262 = vmatpush1.msra.mxu0 0.0
    %2263 = vmatprep.subr.mxu0 0.0
    %2264 = vmatpush1.msra.mxu0 0.0
    %2265 = vmatprep.subr.mxu0 0.0
    %2266 = vmatpush1.msra.mxu0 0.0
    %2267 = vmatprep.subr.mxu0 0.0
    %2268 = vmatpush1.msra.mxu0 0.0
    %2269 = vmatprep.subr.mxu0 0.0
    %2270 = vmatpush1.msra.mxu0 0.0
    %2271 = vmatprep.subr.mxu0 0.0
    %2272 = vmatpush1.msra.mxu0 0.0
    %2273 = vmatprep.subr.mxu0 0.0
    %2274 = vmatpush1.msra.mxu0 0.0
    %2275 = vmatprep.subr.mxu0 0.0
    %2276 = vmatpush1.msra.mxu0 0.0
    %2277 = vmatprep.subr.mxu0 0.0
    %2278 = vmatpush1.msra.mxu0 0.0
    %2279 = vmatprep.subr.mxu0 0.0
    %2280 = vmatpush1.msra.mxu0 0.0
    %2281 = vmatprep.subr.mxu0 0.0
    %2282 = vmatpush1.msra.mxu0 0.0
    %2283 = vmatprep.subr.mxu0 0.0
    %2284 = vmatpush1.msra.mxu0 0.0
    %2285 = vmatprep.subr.mxu0 0.0
    %2286 = vmatpush1.msra.mxu0 0.0
    %2287 = vmatprep.mubr.f32.mxu0 0.0
    %2288 = vmatmul.mubr.f32.gmra.mrb[0].mxu0 %v448
    %v2289 = vpop.f32.mrb[0].mxu0
    %v2290 = vadd.f32 %v2216, %v2289
    %v2291 = vpop.f32.mrb[0].mxu0
    %2292 = vmatprep.mubr.f32.mxu0 0.0
    %2293 = vmatmul.mubr.f32.gmra.mrb[0].mxu0 %v713
    %v2294 = vpop.f32.mrb[0].mxu0
    %v2295 = vadd.f32 %v2216, %v2294
    %v2296 = vpop.f32.mrb[0].mxu0
    %2297 = vmatprep.mubr.f32.mxu0 0.0
    %2298 = vmatmul.mubr.f32.gmra.mrb[0].mxu0 %v978
    %v2299 = vpop.f32.mrb[0].mxu0
    %v2300 = vadd.f32 %v2216, %v2299
    %v2301 = vpop.f32.mrb[0].mxu0
    %2302 = vmatprep.mubr.f32.mxu0 0.0
    %2303 = vmatmul.mubr.f32.gmra.mrb[0].mxu0 %v1243
    %v2304 = vpop.f32.mrb[0].mxu0
    %v2305 = vadd.f32 %v2216, %v2304
    %v2306 = vpop.f32.mrb[0].mxu0
    %2307 = vmatprep.mubr.f32.mxu0 0.0
    %2308 = vmatmul.mubr.f32.gmra.mrb[0].mxu0 %v1508
    %v2309 = vpop.f32.mrb[0].mxu0
    %v2310 = vadd.f32 %v2216, %v2309
    %v2311 = vpop.f32.mrb[0].mxu0
    %2312 = vmatprep.mubr.f32.mxu0 0.0
    %2313 = vmatmul.mubr.f32.gmra.mrb[0].mxu0 %v1773
    %v2314 = vpop.f32.mrb[0].mxu0
    %v2315 = vadd.f32 %v2216, %v2314
    %v2316 = vpop.f32.mrb[0].mxu0
    %2317 = vmatprep.mubr.f32.mxu0 0.0
    %2318 = vmatmul.mubr.f32.gmra.mrb[0].mxu0 %v2038
    %v2319 = vpop.f32.mrb[0].mxu0
    %v2320 = vadd.f32 %v2216, %v2319
    %v2321 = vpop.f32.mrb[0].mxu0
    %2322 = vmatprep.mubr.f32.mxu0 0.0
    %2323 = vmatmul.mubr.f32.gmra.mrb[0].mxu0 %v2221
    %v2324 = vpop.f32.mrb[0].mxu0
    %v2325 = vadd.f32 %v2216, %v2324
    %v2326 = vpop.f32.mrb[0].mxu0
    %2327 = vdwg.mxu0
    %v2328 = vmul.f32 %v2290, 0.5
    %v2329 = vmul.f32 %v2295, 0.5
    %v2330 = vmul.f32 %v2300, 0.5
    %v2331 = vmul.f32 %v2305, 0.5
    %v2332 = vmul.f32 %v2310, 0.5
    %v2333 = vmul.f32 %v2315, 0.5
    %v2334 = vmul.f32 %v2320, 0.5
    %v2335 = vmul.f32 %v2325, 0.5
    %v2336 = vtanh.pop %v2328
    %v2337 = vtanh.pop %v2329
    %v2338 = vtanh.pop %v2330
    %v2339 = vtanh.pop %v2331
    %v2340 = vtanh.pop %v2332
    %v2341 = vtanh.pop %v2333
    %v2342 = vtanh.pop %v2334
    %v2343 = vtanh.pop %v2335
    %v2344 = vadd.f32 %v2336, 1.0
    %v2345 = vadd.f32 %v2337, 1.0
    %v2346 = vadd.f32 %v2338, 1.0
    %v2347 = vadd.f32 %v2339, 1.0
    %v2348 = vadd.f32 %v2340, 1.0
    %v2349 = vadd.f32 %v2341, 1.0
    %v2350 = vadd.f32 %v2342, 1.0
    %v2351 = vadd.f32 %v2343, 1.0
    %v2352 = vmul.f32 %v2344, 0.5
    %v2353 = vmul.f32 %v2345, 0.5
    %v2354 = vmul.f32 %v2346, 0.5
    %v2355 = vmul.f32 %v2347, 0.5
    %v2356 = vmul.f32 %v2348, 0.5
    %v2357 = vmul.f32 %v2349, 0.5
    %v2358 = vmul.f32 %v2350, 0.5
    %v2359 = vmul.f32 %v2351, 0.5
    %2360 = vst [vmem:[#allocation7] sm:$0xff] %v2352
    %2361 = vst [vmem:[#allocation7 + $0x8] sm:$0xff] %v2353
    %2362 = vst [vmem:[#allocation7 + $0x10] sm:$0xff] %v2354
    %2363 = vst [vmem:[#allocation7 + $0x18] sm:$0xff] %v2355
    %2364 = vst [vmem:[#allocation7 + $0x20] sm:$0xff] %v2356
    %2365 = vst [vmem:[#allocation7 + $0x28] sm:$0xff] %v2357
    %2366 = vst [vmem:[#allocation7 + $0x30] sm:$0xff] %v2358
    %2367 = vst [vmem:[#allocation7 + $0x38] sm:$0xff] %v2359
    %2369 = vst.msk [vmem:[#allocation8] sm:$0xff] %vm84, %v2112
    %s2371 = scalar_lea.vmem [#allocation8], 8
    %2372 = vst.msk [vmem:[%s2371] sm:$0xff] %vm84, %v2220
    %2374 = vrot.lane.b32.xlu0 %v2028, 96
    %v2375 = vpop.permute.xlu0 %2374
    %2377 = vst.msk [vmem:[#allocation10] sm:$0xff] %vm84, %v2375
    %2379 = vrot.lane.b32.xlu0 %v2200, 96
    %v2380 = vpop.permute.xlu0 %2379
    %s2382 = scalar_lea.vmem [#allocation10], 8
    %2383 = vst.msk [vmem:[%s2382] sm:$0xff] %vm84, %v2380
    // Predicated region
    $region46: #{tpu_custom_call.1} parent=1 // pred_check
      _
    $region47: #{tpu_custom_call.1} parent=1 // pred_check_branch
      %2385 = sbr.rel (0) target = $region49
    $region48: #{tpu_custom_call.1} parent=1 // pred_region
      %s2387 = ssub.s32 1024, 1024
      %2388 = vsyncadd [#allocation4], %s2387
      %s2389 = sshll.u32 [#allocation7], 4
      %s2390 = int_to_ptr.vmem [resolvable:$true] %s2389
      %2395 = dma.vmem_to_hbm [thread:$0]  %s2390, 1024, %s9, [#allocation4], 128, 128, 8
    $region49: #{tpu_custom_call.1} parent=1 // pred_fallthru
      _
    // Predicated region
    $region50: #{tpu_custom_call.1} parent=1 // pred_check
      _
    $region51: #{tpu_custom_call.1} parent=1 // pred_check_branch
      %2397 = sbr.rel (0) target = $region53
    $region52: #{tpu_custom_call.1} parent=1 // pred_region
      %s2399 = ssub.s32 256, 256
      %2400 = vsyncadd [#allocation9], %s2399
      %s2401 = sshll.u32 [#allocation8], 4
      %s2402 = int_to_ptr.vmem [resolvable:$true] %s2401
      %2407 = dma.vmem_to_hbm [thread:$0]  %s2402, 256, %s10, [#allocation9], 128, 128, 8
    $region53: #{tpu_custom_call.1} parent=1 // pred_fallthru
      _
    // Predicated region
    $region54: #{tpu_custom_call.1} parent=1 // pred_check
      _
    $region55: #{tpu_custom_call.1} parent=1 // pred_check_branch
      %2409 = sbr.rel (0) target = $region57
    $region56: #{tpu_custom_call.1} parent=1 // pred_region
      %s2411 = ssub.s32 256, 256
      %2412 = vsyncadd [#allocation9], %s2411
      %s2413 = sshll.u32 [#allocation10], 4
      %s2414 = int_to_ptr.vmem [resolvable:$true] %s2413
      %2419 = dma.vmem_to_hbm [thread:$0]  %s2414, 256, %s11, [#allocation9], 128, 128, 8
    $region57: #{tpu_custom_call.1} parent=1 // pred_fallthru
      _
    // Predicated region
    $region58: #{tpu_custom_call.1} parent=1 // pred_check
      _
    $region59: #{tpu_custom_call.1} parent=1 // pred_check_branch
      %2421 = sbr.rel (0) target = $region61
    $region60: #{tpu_custom_call.1} parent=1 // pred_region
      %2422 = dma.done [#allocation4], 1024
    $region61: #{tpu_custom_call.1} parent=1 // pred_fallthru
      _
    // Predicated region
    $region62: #{tpu_custom_call.1} parent=1 // pred_check
      _
    $region63: #{tpu_custom_call.1} parent=1 // pred_check_branch
      %2424 = sbr.rel (0) target = $region65
    $region64: #{tpu_custom_call.1} parent=1 // pred_region
      %2425 = dma.done [#allocation9], 256
    $region65: #{tpu_custom_call.1} parent=1 // pred_fallthru
      _
    // Predicated region
    $region66: #{tpu_custom_call.1} parent=1 // pred_check
      _
    $region67: #{tpu_custom_call.1} parent=1 // pred_check_branch
      %2427 = sbr.rel (0) target = $region69
    $region68: #{tpu_custom_call.1} parent=1 // pred_region
      %2428 = dma.done [#allocation9], 256
    $region69: #{tpu_custom_call.1} parent=1 // pred_fallthru
      _
    %2429 = vsyncpa [#allocation3], 1
    %2430 = vsyncpa [#allocation6], 1
    %2431 = vsyncpa [#allocation4], 1
    %2432 = vsyncpa [#allocation9], 1

</llo_original>
